<compile_context>
chip_gen: v7x
topology: tpu7x:2x2x1
jax: 0.10.0
libtpu: 0.0.40
codegen_flags: <defaults>
</compile_context>

<pallas_src>
import jax
import jax.numpy as jnp
from jax.experimental import pallas as pl
from jax.experimental.pallas import tpu as pltpu


def _critic_kernel(s_ref, act_ref, w1s_ref, w1act_ref, b1_ref, w2t_ref, b2_ref,
                   q1_ref, q2_ref):
    """Both critic MLPs fused: one wide layer-1 matmul, VPU layer-2."""
    # Layer 1 for both critics at once: (TB, S)@(S, 2H) + (TB, A)@(A, 2H).
    # Splitting by state/action rows implements the concat without ever
    # materializing a concatenated (or zero-padded) input.
    h = jnp.dot(s_ref[...], w1s_ref[...], preferred_element_type=jnp.float32)
    h = h + jnp.dot(act_ref[...], w1act_ref[...],
                    preferred_element_type=jnp.float32)
    h = jnp.maximum(h + b1_ref[...], 0.0)                     # ReLU, (TB, 2H)

    hidden = h.shape[-1] // 2
    h1 = h[:, :hidden]                                        # critic1 hidden
    h2 = h[:, hidden:]                                        # critic2 hidden

    # Layer 2 with num_agents == 1: a (TB,H)@(H,1) matmul wastes the MXU, so
    # use a VPU multiply + cross-lane reduction (VALU/XLU slots are idle).
    q1_ref[...] = (jnp.sum(h1 * w2t_ref[0:1, :], axis=-1, keepdims=True)
                   + b2_ref[:, 0:1])
    q2_ref[...] = (jnp.sum(h2 * w2t_ref[1:2, :], axis=-1, keepdims=True)
                   + b2_ref[:, 1:2])


def pack_params(params, *, state_dim, action_dim, num_agents=1):
    """One-time packing of the PyTorch-layout params for the fused kernel.

    Keeps only the live (S+A)*num_agents rows of W1 and the first num_agents
    columns of W2 for each critic (exactly what forward() with num_agents==1
    actually uses), and fuses the two critics' layer-1 weights side by side.
    """
    assert num_agents == 1  # forward() semantics of the module
    (w1a, b1a, w2a, b2a, w1b, b1b, w2b, b2b) = params
    s, a = state_dim, action_dim
    d_live = (s + a) * num_agents

    w1_state = jnp.concatenate([w1a[:s, :], w1b[:s, :]], axis=1)        # (S, 2H)
    w1_action = jnp.concatenate([w1a[s:d_live, :], w1b[s:d_live, :]],
                                axis=1)                                  # (A, 2H)
    b1 = jnp.concatenate([b1a, b1b], axis=1)                             # (1, 2H)
    w2t = jnp.stack([w2a[:, 0], w2b[:, 0]], axis=0)                      # (2, H)
    b2 = jnp.stack([b2a[0, 0], b2b[0, 0]]).reshape(1, 2)                 # (1, 2)

    f32 = jnp.float32
    return (w1_state.astype(f32), w1_action.astype(f32), b1.astype(f32),
            w2t.astype(f32), b2.astype(f32))


def critic_monolithic_forward(state, action, packed_params):
    """Reproduces CriticMonolithicPolicy.forward for num_agents == 1.

    state: (B, state_dim)   action: (B, action_dim)
    Returns (x1, x2), each shape (B,).
    """
    w1_state, w1_action, b1, w2t, b2 = packed_params
    b_sz, s_dim = state.shape
    a_dim = action.shape[1]
    two_h = b1.shape[1]

    state = state.astype(jnp.float32)
    action = action.astype(jnp.float32)

    # Batch tiling: shard across TensorCores (v7x has 2) when the batch is
    # large; otherwise a single full-array block (grid loop costs ~0.35us/step).
    if b_sz >= 256 and b_sz % 128 == 0:
        tb = 128
    else:
        tb = b_sz
    grid = (b_sz // tb,)

    resident = lambda shape: pl.BlockSpec(shape, lambda i: (0, 0))
    batched = lambda shape: pl.BlockSpec(shape, lambda i: (i, 0))

    q1, q2 = pl.pallas_call(
        _critic_kernel,
        out_shape=(jax.ShapeDtypeStruct((b_sz, 1), jnp.float32),
                   jax.ShapeDtypeStruct((b_sz, 1), jnp.float32)),
        grid=grid,
        in_specs=[
            batched((tb, s_dim)),          # state tile
            batched((tb, a_dim)),          # action tile
            resident((s_dim, two_h)),      # live W1 state rows, critic1|critic2
            resident((a_dim, two_h)),      # live W1 action rows
            resident((1, two_h)),          # b1, both critics
            resident((2, two_h // 2)),     # W2 column 0 of each critic (row-major)
            resident((1, 2)),              # b2 column 0 of each critic
        ],
        out_specs=(batched((tb, 1)), batched((tb, 1))),
        compiler_params=pltpu.CompilerParams(
            dimension_semantics=("parallel",)),
    )(state, action, w1_state, w1_action, b1, w2t, b2)

    # [:, :num_agents].squeeze(-1) with num_agents == 1 -> (B,)
    return q1[:, 0], q2[:, 0]


def init_params(key, *, state_dim, action_dim, monolithic_max_agent):
    """Deterministic init mimicking nn.Linear (uniform +/- 1/sqrt(fan_in))."""
    d_pad = (state_dim + action_dim) * monolithic_max_agent
    d_out = action_dim * monolithic_max_agent
    hidden = 1024

    def linear(k, fan_in, fan_out):
        kw, kb = jax.random.split(k)
        bound = 1.0 / jnp.sqrt(fan_in)
        w = jax.random.uniform(kw, (fan_in, fan_out), jnp.float32, -bound, bound)
        b = jax.random.uniform(kb, (1, fan_out), jnp.float32, -bound, bound)
        return w, b

    k1, k2, k3, k4 = jax.random.split(key, 4)
    w1a, b1a = linear(k1, d_pad, hidden)
    w2a, b2a = linear(k2, hidden, d_out)
    w1b, b1b = linear(k3, d_pad, hidden)
    w2b, b2b = linear(k4, hidden, d_out)
    return (w1a, b1a, w2a, b2a, w1b, b1b, w2b, b2b)


def _reference(state, action, params, *, state_dim, action_dim,
               monolithic_max_agent, num_agents=1):
    """Pure-JAX reference reproducing the PyTorch forward exactly."""
    b = state.shape[0]
    inpt = jnp.concatenate(
        [state.reshape(b, num_agents, -1), action.reshape(b, num_agents, -1)],
        axis=2).reshape(b, -1)
    pad = (state_dim + action_dim) * (monolithic_max_agent - num_agents)
    inpt = jnp.pad(inpt, ((0, 0), (0, pad))).astype(jnp.float32)
    (w1a, b1a, w2a, b2a, w1b, b1b, w2b, b2b) = params
    q1 = jnp.maximum(inpt @ w1a + b1a, 0.0) @ w2a + b2a
    q2 = jnp.maximum(inpt @ w1b + b1b, 0.0) @ w2b + b2b
    return q1[:, :num_agents].squeeze(-1), q2[:, :num_agents].squeeze(-1)


if __name__ == "__main__":
    # Small shapes consistent with the module's forward (num_agents == 1).
    batch = 2
    state_dim = 4
    action_dim = 2
    monolithic_max_agent = 3

    key = jax.random.PRNGKey(0)
    k_state, k_action, k_params, k_big = jax.random.split(key, 4)
    state = jax.random.normal(k_state, (batch, state_dim), jnp.float32)
    action = jax.random.normal(k_action, (batch, action_dim), jnp.float32)
    params = init_params(k_params, state_dim=state_dim, action_dim=action_dim,
                         monolithic_max_agent=monolithic_max_agent)
    packed = pack_params(params, state_dim=state_dim, action_dim=action_dim)

    # Small-batch path (grid of 1 block).
    x1, x2 = critic_monolithic_forward(state, action, packed)
    jax.block_until_ready((x1, x2))

    r1, r2 = _reference(state, action, params,
                        state_dim=state_dim, action_dim=action_dim,
                        monolithic_max_agent=monolithic_max_agent)
    assert x1.shape == (batch,) and x2.shape == (batch,)
    assert jnp.allclose(x1, r1, atol=1e-4, rtol=1e-4)
    assert jnp.allclose(x2, r2, atol=1e-4, rtol=1e-4)

    # Larger-batch path (exercises the parallel batch grid).
    big_b = 256
    ks, ka = jax.random.split(k_big)
    state_b = jax.random.normal(ks, (big_b, state_dim), jnp.float32)
    action_b = jax.random.normal(ka, (big_b, action_dim), jnp.float32)
    y1, y2 = critic_monolithic_forward(state_b, action_b, packed)
    jax.block_until_ready((y1, y2))
    s1, s2 = _reference(state_b, action_b, params,
                        state_dim=state_dim, action_dim=action_dim,
                        monolithic_max_agent=monolithic_max_agent)
    assert jnp.allclose(y1, s1, atol=1e-4, rtol=1e-4)
    assert jnp.allclose(y2, s2, atol=1e-4, rtol=1e-4)

    # TODO(synk): clear_buffer / change_morphology / torchfold bookkeeping are
    # stateful host-side bookkeeping with no kernel equivalent (not needed for
    # the forward math).
    print("KERNEL_OK")
</pallas_src>

<mosaic_0001>
module attributes {stable_mosaic.version = 11 : i64} {
  func.func @_critic_kernel(%arg0: i32, %arg1: memref<2x4xf32, #tpu.memory_space<vmem>>, %arg2: memref<2x2xf32, #tpu.memory_space<vmem>>, %arg3: memref<4x2048xf32, #tpu.memory_space<vmem>>, %arg4: memref<2x2048xf32, #tpu.memory_space<vmem>>, %arg5: memref<1x2048xf32, #tpu.memory_space<vmem>>, %arg6: memref<2x1024xf32, #tpu.memory_space<vmem>>, %arg7: memref<1x2xf32, #tpu.memory_space<vmem>>, %arg8: memref<2x1xf32, #tpu.memory_space<vmem>>, %arg9: memref<2x1xf32, #tpu.memory_space<vmem>>) attributes {dimension_semantics = [#tpu.dimension_semantics<parallel>], iteration_bounds = array<i64: 1>, scalar_prefetch = 0 : i64, scratch_operands = 0 : i64, tpu.core_type = #tpu.core_type<tc>, window_params = [{transform_indices = @transform_0, window_bounds = array<i64: 2, 4>}, {transform_indices = @transform_1, window_bounds = array<i64: 2, 2>}, {pipeline_mode = #tpu.pipeline_mode<synchronous>, transform_indices = @transform_2, window_bounds = array<i64: 4, 2048>}, {pipeline_mode = #tpu.pipeline_mode<synchronous>, transform_indices = @transform_3, window_bounds = array<i64: 2, 2048>}, {pipeline_mode = #tpu.pipeline_mode<synchronous>, transform_indices = @transform_4, window_bounds = array<i64: 1, 2048>}, {pipeline_mode = #tpu.pipeline_mode<synchronous>, transform_indices = @transform_5, window_bounds = array<i64: 2, 1024>}, {pipeline_mode = #tpu.pipeline_mode<synchronous>, transform_indices = @transform_6, window_bounds = array<i64: 1, 2>}, {transform_indices = @transform_7, window_bounds = array<i64: 2, 1>}, {transform_indices = @transform_8, window_bounds = array<i64: 2, 1>}]} {
    %c0 = arith.constant 0 : index
    %c0_0 = arith.constant 0 : index
    %0 = vector.load %arg1[%c0, %c0_0] : memref<2x4xf32, #tpu.memory_space<vmem>>, vector<2x4xf32>
    %c0_1 = arith.constant 0 : index
    %c0_2 = arith.constant 0 : index
    %1 = vector.load %arg3[%c0_1, %c0_2] : memref<4x2048xf32, #tpu.memory_space<vmem>>, vector<4x2048xf32>
    %cst = arith.constant dense<0.000000e+00> : vector<2x2048xf32>
    %2 = tpu.matmul %0, %1, %cst {dimension_numbers = #tpu.dot_dimension_numbers<[1], [0], [0], [1], [0, 0, 1, 1], [], []>} : vector<2x4xf32>, vector<4x2048xf32>, vector<2x2048xf32> -> vector<2x2048xf32>
    %c0_3 = arith.constant 0 : index
    %c0_4 = arith.constant 0 : index
    %3 = vector.load %arg2[%c0_3, %c0_4] : memref<2x2xf32, #tpu.memory_space<vmem>>, vector<2x2xf32>
    %c0_5 = arith.constant 0 : index
    %c0_6 = arith.constant 0 : index
    %4 = vector.load %arg4[%c0_5, %c0_6] : memref<2x2048xf32, #tpu.memory_space<vmem>>, vector<2x2048xf32>
    %cst_7 = arith.constant dense<0.000000e+00> : vector<2x2048xf32>
    %5 = tpu.matmul %3, %4, %cst_7 {dimension_numbers = #tpu.dot_dimension_numbers<[1], [0], [0], [1], [0, 0, 1, 1], [], []>} : vector<2x2xf32>, vector<2x2048xf32>, vector<2x2048xf32> -> vector<2x2048xf32>
    %6 = arith.addf %2, %5 : vector<2x2048xf32>
    %c0_8 = arith.constant 0 : index
    %c0_9 = arith.constant 0 : index
    %7 = vector.load %arg5[%c0_8, %c0_9] : memref<1x2048xf32, #tpu.memory_space<vmem>>, vector<1x2048xf32>
    %8 = vector.broadcast %7 : vector<1x2048xf32> to vector<2x2048xf32>
    %9 = arith.addf %6, %8 : vector<2x2048xf32>
    %cst_10 = arith.constant 0.000000e+00 : f32
    %10 = vector.broadcast %cst_10 : f32 to vector<2x2048xf32>
    %11 = arith.maximumf %9, %10 : vector<2x2048xf32>
    %12 = vector.extract_strided_slice %11 {offsets = [0, 0], sizes = [2, 1024], strides = [1, 1]} : vector<2x2048xf32> to vector<2x1024xf32>
    %13 = vector.extract_strided_slice %11 {offsets = [0, 1024], sizes = [2, 1024], strides = [1, 1]} : vector<2x2048xf32> to vector<2x1024xf32>
    %c0_11 = arith.constant 0 : index
    %c0_12 = arith.constant 0 : index
    %14 = vector.load %arg6[%c0_11, %c0_12] : memref<2x1024xf32, #tpu.memory_space<vmem>>, vector<1x1024xf32>
    %15 = vector.broadcast %14 : vector<1x1024xf32> to vector<2x1024xf32>
    %16 = arith.mulf %12, %15 : vector<2x1024xf32>
    %cst_13 = arith.constant dense<0.000000e+00> : vector<2xf32>
    %17 = vector.multi_reduction <add>, %16, %cst_13 [1] : vector<2x1024xf32> to vector<2xf32>
    %18 = vector.shape_cast %17 : vector<2xf32> to vector<2x1xf32>
    %c0_14 = arith.constant 0 : index
    %c0_15 = arith.constant 0 : index
    %19 = vector.load %arg7[%c0_14, %c0_15] : memref<1x2xf32, #tpu.memory_space<vmem>>, vector<1x1xf32>
    %20 = vector.broadcast %19 : vector<1x1xf32> to vector<2x1xf32>
    %21 = arith.addf %18, %20 : vector<2x1xf32>
    %c0_16 = arith.constant 0 : index
    %c0_17 = arith.constant 0 : index
    %22 = vector.load %arg8[%c0_16, %c0_17] : memref<2x1xf32, #tpu.memory_space<vmem>>, vector<2x1xf32>
    tpu.vector_store %arg8[%c0_16, %c0_17], %21 {strides = array<i32>} : memref<2x1xf32, #tpu.memory_space<vmem>>, vector<2x1xf32>,
    %c1 = arith.constant 1 : index
    %c0_18 = arith.constant 0 : index
    %23 = vector.load %arg6[%c1, %c0_18] : memref<2x1024xf32, #tpu.memory_space<vmem>>, vector<1x1024xf32>
    %24 = vector.broadcast %23 : vector<1x1024xf32> to vector<2x1024xf32>
    %25 = arith.mulf %13, %24 : vector<2x1024xf32>
    %cst_19 = arith.constant dense<0.000000e+00> : vector<2xf32>
    %26 = vector.multi_reduction <add>, %25, %cst_19 [1] : vector<2x1024xf32> to vector<2xf32>
    %27 = vector.shape_cast %26 : vector<2xf32> to vector<2x1xf32>
    %c0_20 = arith.constant 0 : index
    %c1_21 = arith.constant 1 : index
    %28 = vector.load %arg7[%c0_20, %c1_21] : memref<1x2xf32, #tpu.memory_space<vmem>>, vector<1x1xf32>
    %29 = vector.broadcast %28 : vector<1x1xf32> to vector<2x1xf32>
    %30 = arith.addf %27, %29 : vector<2x1xf32>
    %c0_22 = arith.constant 0 : index
    %c0_23 = arith.constant 0 : index
    %31 = vector.load %arg9[%c0_22, %c0_23] : memref<2x1xf32, #tpu.memory_space<vmem>>, vector<2x1xf32>
    tpu.vector_store %arg9[%c0_22, %c0_23], %30 {strides = array<i32>} : memref<2x1xf32, #tpu.memory_space<vmem>>, vector<2x1xf32>,
    return
  }
  func.func @transform_0(%arg0: i32) -> (i32, i32) {
    %c0_i32 = arith.constant 0 : i32
    %c0_i32_0 = arith.constant 0 : i32
    return %arg0, %c0_i32 : i32, i32
  }
  func.func @transform_1(%arg0: i32) -> (i32, i32) {
    %c0_i32 = arith.constant 0 : i32
    %c0_i32_0 = arith.constant 0 : i32
    return %arg0, %c0_i32 : i32, i32
  }
  func.func @transform_2(%arg0: i32) -> (i32, i32) {
    %c0_i32 = arith.constant 0 : i32
    %c0_i32_0 = arith.constant 0 : i32
    %c0_i32_1 = arith.constant 0 : i32
    return %c0_i32, %c0_i32_0 : i32, i32
  }
  func.func @transform_3(%arg0: i32) -> (i32, i32) {
    %c0_i32 = arith.constant 0 : i32
    %c0_i32_0 = arith.constant 0 : i32
    %c0_i32_1 = arith.constant 0 : i32
    return %c0_i32, %c0_i32_0 : i32, i32
  }
  func.func @transform_4(%arg0: i32) -> (i32, i32) {
    %c0_i32 = arith.constant 0 : i32
    %c0_i32_0 = arith.constant 0 : i32
    %c0_i32_1 = arith.constant 0 : i32
    return %c0_i32, %c0_i32_0 : i32, i32
  }
  func.func @transform_5(%arg0: i32) -> (i32, i32) {
    %c0_i32 = arith.constant 0 : i32
    %c0_i32_0 = arith.constant 0 : i32
    %c0_i32_1 = arith.constant 0 : i32
    return %c0_i32, %c0_i32_0 : i32, i32
  }
  func.func @transform_6(%arg0: i32) -> (i32, i32) {
    %c0_i32 = arith.constant 0 : i32
    %c0_i32_0 = arith.constant 0 : i32
    %c0_i32_1 = arith.constant 0 : i32
    return %c0_i32, %c0_i32_0 : i32, i32
  }
  func.func @transform_7(%arg0: i32) -> (i32, i32) {
    %c0_i32 = arith.constant 0 : i32
    %c0_i32_0 = arith.constant 0 : i32
    return %arg0, %c0_i32 : i32, i32
  }
  func.func @transform_8(%arg0: i32) -> (i32, i32) {
    %c0_i32 = arith.constant 0 : i32
    %c0_i32_0 = arith.constant 0 : i32
    return %arg0, %c0_i32 : i32, i32
  }
}

</mosaic_0001>

<llo_original>
// kernel: tpu_custom_call.1
$region0: #{tpu_custom_call.1}
  #allocation0 [shape = 'u32[]', space=smem, size = 0x4, offset = 0x4, fixed_abs, tag = 'smem constant byte address 0x4 - core index']
  #allocation1 [shape = 'u32[144,128]{1,0:T(1,128)}', space=vmem, size = 0x12000, scoped, tag = 'internal scratch']
  %s0 = inlined_call_operand.hbm [shape: f32[2,4], index: 0, kind: input, shape index: {}]
  %s1 = inlined_call_operand.vmem [shape: f32[2,2], index: 1, kind: input, shape index: {}]
  %s2 = inlined_call_operand.hbm [shape: f32[4,2048], index: 2, kind: input, shape index: {}]
  %s3 = inlined_call_operand.hbm [shape: f32[2,2048], index: 3, kind: input, shape index: {}]
  %s4 = inlined_call_operand.hbm [shape: f32[1,2048], index: 4, kind: input, shape index: {}]
  %s5 = inlined_call_operand.vmem [shape: f32[2,1024], index: 5, kind: input, shape index: {}]
  %s6 = inlined_call_operand.vmem [shape: f32[1,2], index: 6, kind: input, shape index: {}]
  %s7 = inlined_call_operand.vmem [shape: f32[2,1], index: 7, kind: output, shape index: {0}]
  %s8 = inlined_call_operand.vmem [shape: f32[2,1], index: 8, kind: output, shape index: {1}]
  %9 = xla_tuple %s7, %s8
  %s10 = sld [smem:[#allocation0]]
  $region62: #{tpu_custom_call.1} parent=0
    _
  %s12 = ssub.s32 1, %s10
  %s13 = scalar_select 0, %s12, %s10
  $region1: #{tpu_custom_call.1} parent=0
    #allocation2 [shape = 'u8[1024]{0}', space=vmem, size = 0x400, scoped, tag = 'input window, operand 0, single buffered']
    #allocation3 [shape = 's32[1]{0}', space=sflag, size = 0x4, scoped, tag = 'scoped memory for tpu_custom_call.1']
    #allocation4 [shape = 'u8[32768]{0}', space=vmem, size = 0x8000, scoped, tag = 'input window, operand 2, single buffered']
    #allocation5 [shape = 's32[1]{0}', space=sflag, size = 0x4, scoped, tag = 'scoped memory for tpu_custom_call.1']
    #allocation6 [shape = 'u8[16384]{0}', space=vmem, size = 0x4000, scoped, tag = 'input window, operand 3, single buffered']
    #allocation7 [shape = 'u8[8192]{0}', space=vmem, size = 0x2000, scoped, tag = 'input window, operand 4, single buffered']
    #allocation8 [shape = 's32[1]{0}', space=sflag, size = 0x4, scoped, tag = 'scoped memory for tpu_custom_call.1']
    %14 = vsyncpa [#allocation3], 0
    %15 = vsyncpa [#allocation5], 0
    %16 = vsyncpa [#allocation8], 0
    // Predicated region
    $region2: #{tpu_custom_call.1} parent=1 // pred_check
      _
    $region3: #{tpu_custom_call.1} parent=1 // pred_check_branch
      %18 = sbr.rel (0) target = $region5
    $region4: #{tpu_custom_call.1} parent=1 // pred_region
      %s20 = ssub.s32 32, 32
      %21 = vsyncadd [#allocation3], %s20
      %s23 = sshll.u32 [#allocation2], 4
      %s24 = int_to_ptr.vmem [resolvable:$true] %s23
      %26 = dma.hbm_to_vmem [thread:$0]  %s0, 32, %s24, [#allocation3]
    $region5: #{tpu_custom_call.1} parent=1 // pred_fallthru
      _
    // Predicated region
    $region6: #{tpu_custom_call.1} parent=1 // pred_check
      _
    $region7: #{tpu_custom_call.1} parent=1 // pred_check_branch
      %28 = sbr.rel (0) target = $region9
    $region8: #{tpu_custom_call.1} parent=1 // pred_region
      _
    $region9: #{tpu_custom_call.1} parent=1 // pred_fallthru
      _
    // Predicated region
    $region10: #{tpu_custom_call.1} parent=1 // pred_check
      _
    $region11: #{tpu_custom_call.1} parent=1 // pred_check_branch
      %30 = sbr.rel (0) target = $region13
    $region12: #{tpu_custom_call.1} parent=1 // pred_region
      %s32 = ssub.s32 1024, 1024
      %33 = vsyncadd [#allocation5], %s32
      %s35 = sshll.u32 [#allocation4], 4
      %s36 = int_to_ptr.vmem [resolvable:$true] %s35
      %38 = dma.hbm_to_vmem [thread:$0]  %s2, 1024, %s36, [#allocation5]
    $region13: #{tpu_custom_call.1} parent=1 // pred_fallthru
      _
    // Predicated region
    $region14: #{tpu_custom_call.1} parent=1 // pred_check
      _
    $region15: #{tpu_custom_call.1} parent=1 // pred_check_branch
      %40 = sbr.rel (0) target = $region17
    $region16: #{tpu_custom_call.1} parent=1 // pred_region
      %s42 = ssub.s32 512, 512
      %43 = vsyncadd [#allocation5], %s42
      %s45 = sshll.u32 [#allocation6], 4
      %s46 = int_to_ptr.vmem [resolvable:$true] %s45
      %48 = dma.hbm_to_vmem [thread:$0]  %s3, 512, %s46, [#allocation5]
    $region17: #{tpu_custom_call.1} parent=1 // pred_fallthru
      _
    // Predicated region
    $region18: #{tpu_custom_call.1} parent=1 // pred_check
      _
    $region19: #{tpu_custom_call.1} parent=1 // pred_check_branch
      %50 = sbr.rel (0) target = $region21
    $region20: #{tpu_custom_call.1} parent=1 // pred_region
      %s52 = ssub.s32 256, 256
      %53 = vsyncadd [#allocation8], %s52
      %s55 = sshll.u32 [#allocation7], 4
      %s56 = int_to_ptr.vmem [resolvable:$true] %s55
      %58 = dma.hbm_to_vmem [thread:$0]  %s4, 256, %s56, [#allocation8]
    $region21: #{tpu_custom_call.1} parent=1 // pred_fallthru
      _
    // Predicated region
    $region22: #{tpu_custom_call.1} parent=1 // pred_check
      _
    $region23: #{tpu_custom_call.1} parent=1 // pred_check_branch
      %60 = sbr.rel (0) target = $region25
    $region24: #{tpu_custom_call.1} parent=1 // pred_region
      _
    $region25: #{tpu_custom_call.1} parent=1 // pred_fallthru
      _
    // Predicated region
    $region26: #{tpu_custom_call.1} parent=1 // pred_check
      _
    $region27: #{tpu_custom_call.1} parent=1 // pred_check_branch
      %62 = sbr.rel (0) target = $region29
    $region28: #{tpu_custom_call.1} parent=1 // pred_region
      _
    $region29: #{tpu_custom_call.1} parent=1 // pred_fallthru
      _
    // Predicated region
    $region30: #{tpu_custom_call.1} parent=1 // pred_check
      _
    $region31: #{tpu_custom_call.1} parent=1 // pred_check_branch
      %64 = sbr.rel (0) target = $region33
    $region32: #{tpu_custom_call.1} parent=1 // pred_region
      %65 = dma.done [#allocation3], 32
    $region33: #{tpu_custom_call.1} parent=1 // pred_fallthru
      _
    // Predicated region
    $region34: #{tpu_custom_call.1} parent=1 // pred_check
      _
    $region35: #{tpu_custom_call.1} parent=1 // pred_check_branch
      %67 = sbr.rel (0) target = $region37
    $region36: #{tpu_custom_call.1} parent=1 // pred_region
      %68 = dma.done [#allocation5], 1024
    $region37: #{tpu_custom_call.1} parent=1 // pred_fallthru
      _
    // Predicated region
    $region38: #{tpu_custom_call.1} parent=1 // pred_check
      _
    $region39: #{tpu_custom_call.1} parent=1 // pred_check_branch
      %70 = sbr.rel (0) target = $region41
    $region40: #{tpu_custom_call.1} parent=1 // pred_region
      %71 = dma.done [#allocation5], 512
    $region41: #{tpu_custom_call.1} parent=1 // pred_fallthru
      _
    // Predicated region
    $region42: #{tpu_custom_call.1} parent=1 // pred_check
      _
    $region43: #{tpu_custom_call.1} parent=1 // pred_check_branch
      %73 = sbr.rel (0) target = $region45
    $region44: #{tpu_custom_call.1} parent=1 // pred_region
      %74 = dma.done [#allocation8], 256
    $region45: #{tpu_custom_call.1} parent=1 // pred_fallthru
      _
    %v75 = vld [vmem:[#allocation2] sm:$0x3]
    %v76 = vld [vmem:[#allocation4] sm:$0xff]
    %v77 = vld [vmem:[#allocation4 + $0x8] sm:$0xff]
    %v78 = vld [vmem:[#allocation4 + $0x10] sm:$0xff]
    %v79 = vld [vmem:[#allocation4 + $0x18] sm:$0xff]
    %v80 = vld [vmem:[#allocation4 + $0x20] sm:$0xff]
    %v81 = vld [vmem:[#allocation4 + $0x28] sm:$0xff]
    %v82 = vld [vmem:[#allocation4 + $0x30] sm:$0xff]
    %v83 = vld [vmem:[#allocation4 + $0x38] sm:$0xff]
    %v84 = vld [vmem:[%s1] sm:$0x3]
    %v85 = vld [vmem:[#allocation6] sm:$0xff]
    %v86 = vld [vmem:[#allocation6 + $0x8] sm:$0xff]
    %v87 = vld [vmem:[#allocation6 + $0x10] sm:$0xff]
    %v88 = vld [vmem:[#allocation6 + $0x18] sm:$0xff]
    %v93 = vcombine.high %v85, %v85
    %v95 = vunpack.c.l.s4 1983009808
    %v96 = vunpack.c.0.s8 %v95
    %v97 = vlaneseq
    %v98 = vshrl.u32 %v97, 7
    %v99 = vsub.s32 %v96, %v98
    %v100 = vrot.slane %v85, %v99
    %v102 = vunpack.c.l.s4 1983009808
    %v103 = vunpack.c.0.s8 %v102
    %v104 = vlaneseq
    %v105 = vshrl.u32 %v104, 7
    %v106 = vsub.s32 %v103, %v105
    %v107 = vrot.slane %v93, %v106
    %v108 = vcombine.high %v100, %v100
    %v109 = vcombine.high %v107, %v107
    %v110 = vcombine.high %v86, %v86
    %v112 = vunpack.c.l.s4 1983009808
    %v113 = vunpack.c.0.s8 %v112
    %v114 = vlaneseq
    %v115 = vshrl.u32 %v114, 7
    %v116 = vsub.s32 %v113, %v115
    %v117 = vrot.slane %v86, %v116
    %v119 = vunpack.c.l.s4 1983009808
    %v120 = vunpack.c.0.s8 %v119
    %v121 = vlaneseq
    %v122 = vshrl.u32 %v121, 7
    %v123 = vsub.s32 %v120, %v122
    %v124 = vrot.slane %v110, %v123
    %v125 = vcombine.high %v117, %v117
    %v126 = vcombine.high %v124, %v124
    %v127 = vcombine.high %v87, %v87
    %v129 = vunpack.c.l.s4 1983009808
    %v130 = vunpack.c.0.s8 %v129
    %v131 = vlaneseq
    %v132 = vshrl.u32 %v131, 7
    %v133 = vsub.s32 %v130, %v132
    %v134 = vrot.slane %v87, %v133
    %v136 = vunpack.c.l.s4 1983009808
    %v137 = vunpack.c.0.s8 %v136
    %v138 = vlaneseq
    %v139 = vshrl.u32 %v138, 7
    %v140 = vsub.s32 %v137, %v139
    %v141 = vrot.slane %v127, %v140
    %v142 = vcombine.high %v134, %v134
    %v143 = vcombine.high %v141, %v141
    %v144 = vcombine.high %v88, %v88
    %v146 = vunpack.c.l.s4 1983009808
    %v147 = vunpack.c.0.s8 %v146
    %v148 = vlaneseq
    %v149 = vshrl.u32 %v148, 7
    %v150 = vsub.s32 %v147, %v149
    %v151 = vrot.slane %v88, %v150
    %v153 = vunpack.c.l.s4 1983009808
    %v154 = vunpack.c.0.s8 %v153
    %v155 = vlaneseq
    %v156 = vshrl.u32 %v155, 7
    %v157 = vsub.s32 %v154, %v156
    %v158 = vrot.slane %v144, %v157
    %v159 = vcombine.high %v151, %v151
    %v160 = vcombine.high %v158, %v158
    %vm161 = vcmask 15360
    %v163 = vsel %vm161, %v84, 0
    %vm165 = vcmask 1041408
    %v166 = vsel %vm165, %v100, 0
    %v168 = vsel %vm165, %v108, 0
    %v170 = vsel %vm165, %v107, 0
    %v172 = vsel %vm165, %v109, 0
    %v174 = vsel %vm165, %v117, 0
    %v176 = vsel %vm165, %v125, 0
    %v178 = vsel %vm165, %v124, 0
    %v180 = vsel %vm165, %v126, 0
    %v182 = vsel %vm165, %v134, 0
    %v184 = vsel %vm165, %v142, 0
    %v186 = vsel %vm165, %v141, 0
    %v188 = vsel %vm165, %v143, 0
    %v190 = vsel %vm165, %v151, 0
    %v192 = vsel %vm165, %v159, 0
    %v194 = vsel %vm165, %v158, 0
    %v196 = vsel %vm165, %v160, 0
    %198 = vmatprep.subr.mxu0 %v168
    %199 = vmatpush1.msra.mxu0 %v166
    %200 = vmatprep.subr.mxu0 0.0
    %201 = vmatpush1.msra.mxu0 0.0
    %202 = vmatprep.subr.mxu0 0.0
    %203 = vmatpush1.msra.mxu0 0.0
    %204 = vmatprep.subr.mxu0 0.0
    %205 = vmatpush1.msra.mxu0 0.0
    %206 = vmatprep.subr.mxu0 0.0
    %207 = vmatpush1.msra.mxu0 0.0
    %208 = vmatprep.subr.mxu0 0.0
    %209 = vmatpush1.msra.mxu0 0.0
    %210 = vmatprep.subr.mxu0 0.0
    %211 = vmatpush1.msra.mxu0 0.0
    %212 = vmatprep.subr.mxu0 0.0
    %213 = vmatpush1.msra.mxu0 0.0
    %214 = vmatprep.subr.mxu0 0.0
    %215 = vmatpush1.msra.mxu0 0.0
    %216 = vmatprep.subr.mxu0 0.0
    %217 = vmatpush1.msra.mxu0 0.0
    %218 = vmatprep.subr.mxu0 0.0
    %219 = vmatpush1.msra.mxu0 0.0
    %220 = vmatprep.subr.mxu0 0.0
    %221 = vmatpush1.msra.mxu0 0.0
    %222 = vmatprep.subr.mxu0 0.0
    %223 = vmatpush1.msra.mxu0 0.0
    %224 = vmatprep.subr.mxu0 0.0
    %225 = vmatpush1.msra.mxu0 0.0
    %226 = vmatprep.subr.mxu0 0.0
    %227 = vmatpush1.msra.mxu0 0.0
    %228 = vmatprep.subr.mxu0 0.0
    %229 = vmatpush1.msra.mxu0 0.0
    %230 = vmatprep.subr.mxu0 0.0
    %231 = vmatpush1.msra.mxu0 0.0
    %232 = vmatprep.subr.mxu0 0.0
    %233 = vmatpush1.msra.mxu0 0.0
    %234 = vmatprep.subr.mxu0 0.0
    %235 = vmatpush1.msra.mxu0 0.0
    %236 = vmatprep.subr.mxu0 0.0
    %237 = vmatpush1.msra.mxu0 0.0
    %238 = vmatprep.subr.mxu0 0.0
    %239 = vmatpush1.msra.mxu0 0.0
    %240 = vmatprep.subr.mxu0 0.0
    %241 = vmatpush1.msra.mxu0 0.0
    %242 = vmatprep.subr.mxu0 0.0
    %243 = vmatpush1.msra.mxu0 0.0
    %244 = vmatprep.subr.mxu0 0.0
    %245 = vmatpush1.msra.mxu0 0.0
    %246 = vmatprep.subr.mxu0 0.0
    %247 = vmatpush1.msra.mxu0 0.0
    %248 = vmatprep.subr.mxu0 0.0
    %249 = vmatpush1.msra.mxu0 0.0
    %250 = vmatprep.subr.mxu0 0.0
    %251 = vmatpush1.msra.mxu0 0.0
    %252 = vmatprep.subr.mxu0 0.0
    %253 = vmatpush1.msra.mxu0 0.0
    %254 = vmatprep.subr.mxu0 0.0
    %255 = vmatpush1.msra.mxu0 0.0
    %256 = vmatprep.subr.mxu0 0.0
    %257 = vmatpush1.msra.mxu0 0.0
    %258 = vmatprep.subr.mxu0 0.0
    %259 = vmatpush1.msra.mxu0 0.0
    %260 = vmatprep.subr.mxu0 0.0
    %261 = vmatpush1.msra.mxu0 0.0
    %262 = vmatprep.mubr.f32.mxu0 0.0
    %263 = vmatmul.mubr.f32.gmra.mrb[0].mxu0 %v163
    %v264 = vpop.f32.mrb[0].mxu0
    %v265 = vadd.f32 0.0, %v264
    %v266 = vpop.f32.mrb[0].mxu0
    %v267 = vadd.f32 0.0, %v266
    %268 = vdwg.mxu0
    %269 = vmatprep.subr.mxu0 %v172
    %270 = vmatpush1.msra.mxu0 %v170
    %271 = vmatprep.subr.mxu0 0.0
    %272 = vmatpush1.msra.mxu0 0.0
    %273 = vmatprep.subr.mxu0 0.0
    %274 = vmatpush1.msra.mxu0 0.0
    %275 = vmatprep.subr.mxu0 0.0
    %276 = vmatpush1.msra.mxu0 0.0
    %277 = vmatprep.subr.mxu0 0.0
    %278 = vmatpush1.msra.mxu0 0.0
    %279 = vmatprep.subr.mxu0 0.0
    %280 = vmatpush1.msra.mxu0 0.0
    %281 = vmatprep.subr.mxu0 0.0
    %282 = vmatpush1.msra.mxu0 0.0
    %283 = vmatprep.subr.mxu0 0.0
    %284 = vmatpush1.msra.mxu0 0.0
    %285 = vmatprep.subr.mxu0 0.0
    %286 = vmatpush1.msra.mxu0 0.0
    %287 = vmatprep.subr.mxu0 0.0
    %288 = vmatpush1.msra.mxu0 0.0
    %289 = vmatprep.subr.mxu0 0.0
    %290 = vmatpush1.msra.mxu0 0.0
    %291 = vmatprep.subr.mxu0 0.0
    %292 = vmatpush1.msra.mxu0 0.0
    %293 = vmatprep.subr.mxu0 0.0
    %294 = vmatpush1.msra.mxu0 0.0
    %295 = vmatprep.subr.mxu0 0.0
    %296 = vmatpush1.msra.mxu0 0.0
    %297 = vmatprep.subr.mxu0 0.0
    %298 = vmatpush1.msra.mxu0 0.0
    %299 = vmatprep.subr.mxu0 0.0
    %300 = vmatpush1.msra.mxu0 0.0
    %301 = vmatprep.subr.mxu0 0.0
    %302 = vmatpush1.msra.mxu0 0.0
    %303 = vmatprep.subr.mxu0 0.0
    %304 = vmatpush1.msra.mxu0 0.0
    %305 = vmatprep.subr.mxu0 0.0
    %306 = vmatpush1.msra.mxu0 0.0
    %307 = vmatprep.subr.mxu0 0.0
    %308 = vmatpush1.msra.mxu0 0.0
    %309 = vmatprep.subr.mxu0 0.0
    %310 = vmatpush1.msra.mxu0 0.0
    %311 = vmatprep.subr.mxu0 0.0
    %312 = vmatpush1.msra.mxu0 0.0
    %313 = vmatprep.subr.mxu0 0.0
    %314 = vmatpush1.msra.mxu0 0.0
    %315 = vmatprep.subr.mxu0 0.0
    %316 = vmatpush1.msra.mxu0 0.0
    %317 = vmatprep.subr.mxu0 0.0
    %318 = vmatpush1.msra.mxu0 0.0
    %319 = vmatprep.subr.mxu0 0.0
    %320 = vmatpush1.msra.mxu0 0.0
    %321 = vmatprep.subr.mxu0 0.0
    %322 = vmatpush1.msra.mxu0 0.0
    %323 = vmatprep.subr.mxu0 0.0
    %324 = vmatpush1.msra.mxu0 0.0
    %325 = vmatprep.subr.mxu0 0.0
    %326 = vmatpush1.msra.mxu0 0.0
    %327 = vmatprep.subr.mxu0 0.0
    %328 = vmatpush1.msra.mxu0 0.0
    %329 = vmatprep.subr.mxu0 0.0
    %330 = vmatpush1.msra.mxu0 0.0
    %331 = vmatprep.subr.mxu0 0.0
    %332 = vmatpush1.msra.mxu0 0.0
    %333 = vmatprep.mubr.f32.mxu0 0.0
    %334 = vmatmul.mubr.f32.gmra.mrb[0].mxu0 %v163
    %v335 = vpop.f32.mrb[0].mxu0
    %v336 = vadd.f32 0.0, %v335
    %v337 = vpop.f32.mrb[0].mxu0
    %v338 = vadd.f32 0.0, %v337
    %339 = vdwg.mxu0
    %340 = vmatprep.subr.mxu0 %v176
    %341 = vmatpush1.msra.mxu0 %v174
    %342 = vmatprep.subr.mxu0 0.0
    %343 = vmatpush1.msra.mxu0 0.0
    %344 = vmatprep.subr.mxu0 0.0
    %345 = vmatpush1.msra.mxu0 0.0
    %346 = vmatprep.subr.mxu0 0.0
    %347 = vmatpush1.msra.mxu0 0.0
    %348 = vmatprep.subr.mxu0 0.0
    %349 = vmatpush1.msra.mxu0 0.0
    %350 = vmatprep.subr.mxu0 0.0
    %351 = vmatpush1.msra.mxu0 0.0
    %352 = vmatprep.subr.mxu0 0.0
    %353 = vmatpush1.msra.mxu0 0.0
    %354 = vmatprep.subr.mxu0 0.0
    %355 = vmatpush1.msra.mxu0 0.0
    %356 = vmatprep.subr.mxu0 0.0
    %357 = vmatpush1.msra.mxu0 0.0
    %358 = vmatprep.subr.mxu0 0.0
    %359 = vmatpush1.msra.mxu0 0.0
    %360 = vmatprep.subr.mxu0 0.0
    %361 = vmatpush1.msra.mxu0 0.0
    %362 = vmatprep.subr.mxu0 0.0
    %363 = vmatpush1.msra.mxu0 0.0
    %364 = vmatprep.subr.mxu0 0.0
    %365 = vmatpush1.msra.mxu0 0.0
    %366 = vmatprep.subr.mxu0 0.0
    %367 = vmatpush1.msra.mxu0 0.0
    %368 = vmatprep.subr.mxu0 0.0
    %369 = vmatpush1.msra.mxu0 0.0
    %370 = vmatprep.subr.mxu0 0.0
    %371 = vmatpush1.msra.mxu0 0.0
    %372 = vmatprep.subr.mxu0 0.0
    %373 = vmatpush1.msra.mxu0 0.0
    %374 = vmatprep.subr.mxu0 0.0
    %375 = vmatpush1.msra.mxu0 0.0
    %376 = vmatprep.subr.mxu0 0.0
    %377 = vmatpush1.msra.mxu0 0.0
    %378 = vmatprep.subr.mxu0 0.0
    %379 = vmatpush1.msra.mxu0 0.0
    %380 = vmatprep.subr.mxu0 0.0
    %381 = vmatpush1.msra.mxu0 0.0
    %382 = vmatprep.subr.mxu0 0.0
    %383 = vmatpush1.msra.mxu0 0.0
    %384 = vmatprep.subr.mxu0 0.0
    %385 = vmatpush1.msra.mxu0 0.0
    %386 = vmatprep.subr.mxu0 0.0
    %387 = vmatpush1.msra.mxu0 0.0
    %388 = vmatprep.subr.mxu0 0.0
    %389 = vmatpush1.msra.mxu0 0.0
    %390 = vmatprep.subr.mxu0 0.0
    %391 = vmatpush1.msra.mxu0 0.0
    %392 = vmatprep.subr.mxu0 0.0
    %393 = vmatpush1.msra.mxu0 0.0
    %394 = vmatprep.subr.mxu0 0.0
    %395 = vmatpush1.msra.mxu0 0.0
    %396 = vmatprep.subr.mxu0 0.0
    %397 = vmatpush1.msra.mxu0 0.0
    %398 = vmatprep.subr.mxu0 0.0
    %399 = vmatpush1.msra.mxu0 0.0
    %400 = vmatprep.subr.mxu0 0.0
    %401 = vmatpush1.msra.mxu0 0.0
    %402 = vmatprep.subr.mxu0 0.0
    %403 = vmatpush1.msra.mxu0 0.0
    %404 = vmatprep.mubr.f32.mxu0 0.0
    %405 = vmatmul.mubr.f32.gmra.mrb[0].mxu0 %v163
    %v406 = vpop.f32.mrb[0].mxu0
    %v407 = vadd.f32 0.0, %v406
    %v408 = vpop.f32.mrb[0].mxu0
    %v409 = vadd.f32 0.0, %v408
    %410 = vdwg.mxu0
    %411 = vmatprep.subr.mxu0 %v180
    %412 = vmatpush1.msra.mxu0 %v178
    %413 = vmatprep.subr.mxu0 0.0
    %414 = vmatpush1.msra.mxu0 0.0
    %415 = vmatprep.subr.mxu0 0.0
    %416 = vmatpush1.msra.mxu0 0.0
    %417 = vmatprep.subr.mxu0 0.0
    %418 = vmatpush1.msra.mxu0 0.0
    %419 = vmatprep.subr.mxu0 0.0
    %420 = vmatpush1.msra.mxu0 0.0
    %421 = vmatprep.subr.mxu0 0.0
    %422 = vmatpush1.msra.mxu0 0.0
    %423 = vmatprep.subr.mxu0 0.0
    %424 = vmatpush1.msra.mxu0 0.0
    %425 = vmatprep.subr.mxu0 0.0
    %426 = vmatpush1.msra.mxu0 0.0
    %427 = vmatprep.subr.mxu0 0.0
    %428 = vmatpush1.msra.mxu0 0.0
    %429 = vmatprep.subr.mxu0 0.0
    %430 = vmatpush1.msra.mxu0 0.0
    %431 = vmatprep.subr.mxu0 0.0
    %432 = vmatpush1.msra.mxu0 0.0
    %433 = vmatprep.subr.mxu0 0.0
    %434 = vmatpush1.msra.mxu0 0.0
    %435 = vmatprep.subr.mxu0 0.0
    %436 = vmatpush1.msra.mxu0 0.0
    %437 = vmatprep.subr.mxu0 0.0
    %438 = vmatpush1.msra.mxu0 0.0
    %439 = vmatprep.subr.mxu0 0.0
    %440 = vmatpush1.msra.mxu0 0.0
    %441 = vmatprep.subr.mxu0 0.0
    %442 = vmatpush1.msra.mxu0 0.0
    %443 = vmatprep.subr.mxu0 0.0
    %444 = vmatpush1.msra.mxu0 0.0
    %445 = vmatprep.subr.mxu0 0.0
    %446 = vmatpush1.msra.mxu0 0.0
    %447 = vmatprep.subr.mxu0 0.0
    %448 = vmatpush1.msra.mxu0 0.0
    %449 = vmatprep.subr.mxu0 0.0
    %450 = vmatpush1.msra.mxu0 0.0
    %451 = vmatprep.subr.mxu0 0.0
    %452 = vmatpush1.msra.mxu0 0.0
    %453 = vmatprep.subr.mxu0 0.0
    %454 = vmatpush1.msra.mxu0 0.0
    %455 = vmatprep.subr.mxu0 0.0
    %456 = vmatpush1.msra.mxu0 0.0
    %457 = vmatprep.subr.mxu0 0.0
    %458 = vmatpush1.msra.mxu0 0.0
    %459 = vmatprep.subr.mxu0 0.0
    %460 = vmatpush1.msra.mxu0 0.0
    %461 = vmatprep.subr.mxu0 0.0
    %462 = vmatpush1.msra.mxu0 0.0
    %463 = vmatprep.subr.mxu0 0.0
    %464 = vmatpush1.msra.mxu0 0.0
    %465 = vmatprep.subr.mxu0 0.0
    %466 = vmatpush1.msra.mxu0 0.0
    %467 = vmatprep.subr.mxu0 0.0
    %468 = vmatpush1.msra.mxu0 0.0
    %469 = vmatprep.subr.mxu0 0.0
    %470 = vmatpush1.msra.mxu0 0.0
    %471 = vmatprep.subr.mxu0 0.0
    %472 = vmatpush1.msra.mxu0 0.0
    %473 = vmatprep.subr.mxu0 0.0
    %474 = vmatpush1.msra.mxu0 0.0
    %475 = vmatprep.mubr.f32.mxu0 0.0
    %476 = vmatmul.mubr.f32.gmra.mrb[0].mxu0 %v163
    %v477 = vpop.f32.mrb[0].mxu0
    %v478 = vadd.f32 0.0, %v477
    %v479 = vpop.f32.mrb[0].mxu0
    %v480 = vadd.f32 0.0, %v479
    %481 = vdwg.mxu0
    %482 = vmatprep.subr.mxu0 %v184
    %483 = vmatpush1.msra.mxu0 %v182
    %484 = vmatprep.subr.mxu0 0.0
    %485 = vmatpush1.msra.mxu0 0.0
    %486 = vmatprep.subr.mxu0 0.0
    %487 = vmatpush1.msra.mxu0 0.0
    %488 = vmatprep.subr.mxu0 0.0
    %489 = vmatpush1.msra.mxu0 0.0
    %490 = vmatprep.subr.mxu0 0.0
    %491 = vmatpush1.msra.mxu0 0.0
    %492 = vmatprep.subr.mxu0 0.0
    %493 = vmatpush1.msra.mxu0 0.0
    %494 = vmatprep.subr.mxu0 0.0
    %495 = vmatpush1.msra.mxu0 0.0
    %496 = vmatprep.subr.mxu0 0.0
    %497 = vmatpush1.msra.mxu0 0.0
    %498 = vmatprep.subr.mxu0 0.0
    %499 = vmatpush1.msra.mxu0 0.0
    %500 = vmatprep.subr.mxu0 0.0
    %501 = vmatpush1.msra.mxu0 0.0
    %502 = vmatprep.subr.mxu0 0.0
    %503 = vmatpush1.msra.mxu0 0.0
    %504 = vmatprep.subr.mxu0 0.0
    %505 = vmatpush1.msra.mxu0 0.0
    %506 = vmatprep.subr.mxu0 0.0
    %507 = vmatpush1.msra.mxu0 0.0
    %508 = vmatprep.subr.mxu0 0.0
    %509 = vmatpush1.msra.mxu0 0.0
    %510 = vmatprep.subr.mxu0 0.0
    %511 = vmatpush1.msra.mxu0 0.0
    %512 = vmatprep.subr.mxu0 0.0
    %513 = vmatpush1.msra.mxu0 0.0
    %514 = vmatprep.subr.mxu0 0.0
    %515 = vmatpush1.msra.mxu0 0.0
    %516 = vmatprep.subr.mxu0 0.0
    %517 = vmatpush1.msra.mxu0 0.0
    %518 = vmatprep.subr.mxu0 0.0
    %519 = vmatpush1.msra.mxu0 0.0
    %520 = vmatprep.subr.mxu0 0.0
    %521 = vmatpush1.msra.mxu0 0.0
    %522 = vmatprep.subr.mxu0 0.0
    %523 = vmatpush1.msra.mxu0 0.0
    %524 = vmatprep.subr.mxu0 0.0
    %525 = vmatpush1.msra.mxu0 0.0
    %526 = vmatprep.subr.mxu0 0.0
    %527 = vmatpush1.msra.mxu0 0.0
    %528 = vmatprep.subr.mxu0 0.0
    %529 = vmatpush1.msra.mxu0 0.0
    %530 = vmatprep.subr.mxu0 0.0
    %531 = vmatpush1.msra.mxu0 0.0
    %532 = vmatprep.subr.mxu0 0.0
    %533 = vmatpush1.msra.mxu0 0.0
    %534 = vmatprep.subr.mxu0 0.0
    %535 = vmatpush1.msra.mxu0 0.0
    %536 = vmatprep.subr.mxu0 0.0
    %537 = vmatpush1.msra.mxu0 0.0
    %538 = vmatprep.subr.mxu0 0.0
    %539 = vmatpush1.msra.mxu0 0.0
    %540 = vmatprep.subr.mxu0 0.0
    %541 = vmatpush1.msra.mxu0 0.0
    %542 = vmatprep.subr.mxu0 0.0
    %543 = vmatpush1.msra.mxu0 0.0
    %544 = vmatprep.subr.mxu0 0.0
    %545 = vmatpush1.msra.mxu0 0.0
    %546 = vmatprep.mubr.f32.mxu0 0.0
    %547 = vmatmul.mubr.f32.gmra.mrb[0].mxu0 %v163
    %v548 = vpop.f32.mrb[0].mxu0
    %v549 = vadd.f32 0.0, %v548
    %v550 = vpop.f32.mrb[0].mxu0
    %v551 = vadd.f32 0.0, %v550
    %552 = vdwg.mxu0
    %553 = vmatprep.subr.mxu0 %v188
    %554 = vmatpush1.msra.mxu0 %v186
    %555 = vmatprep.subr.mxu0 0.0
    %556 = vmatpush1.msra.mxu0 0.0
    %557 = vmatprep.subr.mxu0 0.0
    %558 = vmatpush1.msra.mxu0 0.0
    %559 = vmatprep.subr.mxu0 0.0
    %560 = vmatpush1.msra.mxu0 0.0
    %561 = vmatprep.subr.mxu0 0.0
    %562 = vmatpush1.msra.mxu0 0.0
    %563 = vmatprep.subr.mxu0 0.0
    %564 = vmatpush1.msra.mxu0 0.0
    %565 = vmatprep.subr.mxu0 0.0
    %566 = vmatpush1.msra.mxu0 0.0
    %567 = vmatprep.subr.mxu0 0.0
    %568 = vmatpush1.msra.mxu0 0.0
    %569 = vmatprep.subr.mxu0 0.0
    %570 = vmatpush1.msra.mxu0 0.0
    %571 = vmatprep.subr.mxu0 0.0
    %572 = vmatpush1.msra.mxu0 0.0
    %573 = vmatprep.subr.mxu0 0.0
    %574 = vmatpush1.msra.mxu0 0.0
    %575 = vmatprep.subr.mxu0 0.0
    %576 = vmatpush1.msra.mxu0 0.0
    %577 = vmatprep.subr.mxu0 0.0
    %578 = vmatpush1.msra.mxu0 0.0
    %579 = vmatprep.subr.mxu0 0.0
    %580 = vmatpush1.msra.mxu0 0.0
    %581 = vmatprep.subr.mxu0 0.0
    %582 = vmatpush1.msra.mxu0 0.0
    %583 = vmatprep.subr.mxu0 0.0
    %584 = vmatpush1.msra.mxu0 0.0
    %585 = vmatprep.subr.mxu0 0.0
    %586 = vmatpush1.msra.mxu0 0.0
    %587 = vmatprep.subr.mxu0 0.0
    %588 = vmatpush1.msra.mxu0 0.0
    %589 = vmatprep.subr.mxu0 0.0
    %590 = vmatpush1.msra.mxu0 0.0
    %591 = vmatprep.subr.mxu0 0.0
    %592 = vmatpush1.msra.mxu0 0.0
    %593 = vmatprep.subr.mxu0 0.0
    %594 = vmatpush1.msra.mxu0 0.0
    %595 = vmatprep.subr.mxu0 0.0
    %596 = vmatpush1.msra.mxu0 0.0
    %597 = vmatprep.subr.mxu0 0.0
    %598 = vmatpush1.msra.mxu0 0.0
    %599 = vmatprep.subr.mxu0 0.0
    %600 = vmatpush1.msra.mxu0 0.0
    %601 = vmatprep.subr.mxu0 0.0
    %602 = vmatpush1.msra.mxu0 0.0
    %603 = vmatprep.subr.mxu0 0.0
    %604 = vmatpush1.msra.mxu0 0.0
    %605 = vmatprep.subr.mxu0 0.0
    %606 = vmatpush1.msra.mxu0 0.0
    %607 = vmatprep.subr.mxu0 0.0
    %608 = vmatpush1.msra.mxu0 0.0
    %609 = vmatprep.subr.mxu0 0.0
    %610 = vmatpush1.msra.mxu0 0.0
    %611 = vmatprep.subr.mxu0 0.0
    %612 = vmatpush1.msra.mxu0 0.0
    %613 = vmatprep.subr.mxu0 0.0
    %614 = vmatpush1.msra.mxu0 0.0
    %615 = vmatprep.subr.mxu0 0.0
    %616 = vmatpush1.msra.mxu0 0.0
    %617 = vmatprep.mubr.f32.mxu0 0.0
    %618 = vmatmul.mubr.f32.gmra.mrb[0].mxu0 %v163
    %v619 = vpop.f32.mrb[0].mxu0
    %v620 = vadd.f32 0.0, %v619
    %v621 = vpop.f32.mrb[0].mxu0
    %v622 = vadd.f32 0.0, %v621
    %623 = vdwg.mxu0
    %624 = vmatprep.subr.mxu0 %v192
    %625 = vmatpush1.msra.mxu0 %v190
    %626 = vmatprep.subr.mxu0 0.0
    %627 = vmatpush1.msra.mxu0 0.0
    %628 = vmatprep.subr.mxu0 0.0
    %629 = vmatpush1.msra.mxu0 0.0
    %630 = vmatprep.subr.mxu0 0.0
    %631 = vmatpush1.msra.mxu0 0.0
    %632 = vmatprep.subr.mxu0 0.0
    %633 = vmatpush1.msra.mxu0 0.0
    %634 = vmatprep.subr.mxu0 0.0
    %635 = vmatpush1.msra.mxu0 0.0
    %636 = vmatprep.subr.mxu0 0.0
    %637 = vmatpush1.msra.mxu0 0.0
    %638 = vmatprep.subr.mxu0 0.0
    %639 = vmatpush1.msra.mxu0 0.0
    %640 = vmatprep.subr.mxu0 0.0
    %641 = vmatpush1.msra.mxu0 0.0
    %642 = vmatprep.subr.mxu0 0.0
    %643 = vmatpush1.msra.mxu0 0.0
    %644 = vmatprep.subr.mxu0 0.0
    %645 = vmatpush1.msra.mxu0 0.0
    %646 = vmatprep.subr.mxu0 0.0
    %647 = vmatpush1.msra.mxu0 0.0
    %648 = vmatprep.subr.mxu0 0.0
    %649 = vmatpush1.msra.mxu0 0.0
    %650 = vmatprep.subr.mxu0 0.0
    %651 = vmatpush1.msra.mxu0 0.0
    %652 = vmatprep.subr.mxu0 0.0
    %653 = vmatpush1.msra.mxu0 0.0
    %654 = vmatprep.subr.mxu0 0.0
    %655 = vmatpush1.msra.mxu0 0.0
    %656 = vmatprep.subr.mxu0 0.0
    %657 = vmatpush1.msra.mxu0 0.0
    %658 = vmatprep.subr.mxu0 0.0
    %659 = vmatpush1.msra.mxu0 0.0
    %660 = vmatprep.subr.mxu0 0.0
    %661 = vmatpush1.msra.mxu0 0.0
    %662 = vmatprep.subr.mxu0 0.0
    %663 = vmatpush1.msra.mxu0 0.0
    %664 = vmatprep.subr.mxu0 0.0
    %665 = vmatpush1.msra.mxu0 0.0
    %666 = vmatprep.subr.mxu0 0.0
    %667 = vmatpush1.msra.mxu0 0.0
    %668 = vmatprep.subr.mxu0 0.0
    %669 = vmatpush1.msra.mxu0 0.0
    %670 = vmatprep.subr.mxu0 0.0
    %671 = vmatpush1.msra.mxu0 0.0
    %672 = vmatprep.subr.mxu0 0.0
    %673 = vmatpush1.msra.mxu0 0.0
    %674 = vmatprep.subr.mxu0 0.0
    %675 = vmatpush1.msra.mxu0 0.0
    %676 = vmatprep.subr.mxu0 0.0
    %677 = vmatpush1.msra.mxu0 0.0
    %678 = vmatprep.subr.mxu0 0.0
    %679 = vmatpush1.msra.mxu0 0.0
    %680 = vmatprep.subr.mxu0 0.0
    %681 = vmatpush1.msra.mxu0 0.0
    %682 = vmatprep.subr.mxu0 0.0
    %683 = vmatpush1.msra.mxu0 0.0
    %684 = vmatprep.subr.mxu0 0.0
    %685 = vmatpush1.msra.mxu0 0.0
    %686 = vmatprep.subr.mxu0 0.0
    %687 = vmatpush1.msra.mxu0 0.0
    %688 = vmatprep.mubr.f32.mxu0 0.0
    %689 = vmatmul.mubr.f32.gmra.mrb[0].mxu0 %v163
    %v690 = vpop.f32.mrb[0].mxu0
    %v691 = vadd.f32 0.0, %v690
    %v692 = vpop.f32.mrb[0].mxu0
    %v693 = vadd.f32 0.0, %v692
    %694 = vdwg.mxu0
    %695 = vmatprep.subr.mxu0 %v196
    %696 = vmatpush1.msra.mxu0 %v194
    %697 = vmatprep.subr.mxu0 0.0
    %698 = vmatpush1.msra.mxu0 0.0
    %699 = vmatprep.subr.mxu0 0.0
    %700 = vmatpush1.msra.mxu0 0.0
    %701 = vmatprep.subr.mxu0 0.0
    %702 = vmatpush1.msra.mxu0 0.0
    %703 = vmatprep.subr.mxu0 0.0
    %704 = vmatpush1.msra.mxu0 0.0
    %705 = vmatprep.subr.mxu0 0.0
    %706 = vmatpush1.msra.mxu0 0.0
    %707 = vmatprep.subr.mxu0 0.0
    %708 = vmatpush1.msra.mxu0 0.0
    %709 = vmatprep.subr.mxu0 0.0
    %710 = vmatpush1.msra.mxu0 0.0
    %711 = vmatprep.subr.mxu0 0.0
    %712 = vmatpush1.msra.mxu0 0.0
    %713 = vmatprep.subr.mxu0 0.0
    %714 = vmatpush1.msra.mxu0 0.0
    %715 = vmatprep.subr.mxu0 0.0
    %716 = vmatpush1.msra.mxu0 0.0
    %717 = vmatprep.subr.mxu0 0.0
    %718 = vmatpush1.msra.mxu0 0.0
    %719 = vmatprep.subr.mxu0 0.0
    %720 = vmatpush1.msra.mxu0 0.0
    %721 = vmatprep.subr.mxu0 0.0
    %722 = vmatpush1.msra.mxu0 0.0
    %723 = vmatprep.subr.mxu0 0.0
    %724 = vmatpush1.msra.mxu0 0.0
    %725 = vmatprep.subr.mxu0 0.0
    %726 = vmatpush1.msra.mxu0 0.0
    %727 = vmatprep.subr.mxu0 0.0
    %728 = vmatpush1.msra.mxu0 0.0
    %729 = vmatprep.subr.mxu0 0.0
    %730 = vmatpush1.msra.mxu0 0.0
    %731 = vmatprep.subr.mxu0 0.0
    %732 = vmatpush1.msra.mxu0 0.0
    %733 = vmatprep.subr.mxu0 0.0
    %734 = vmatpush1.msra.mxu0 0.0
    %735 = vmatprep.subr.mxu0 0.0
    %736 = vmatpush1.msra.mxu0 0.0
    %737 = vmatprep.subr.mxu0 0.0
    %738 = vmatpush1.msra.mxu0 0.0
    %739 = vmatprep.subr.mxu0 0.0
    %740 = vmatpush1.msra.mxu0 0.0
    %741 = vmatprep.subr.mxu0 0.0
    %742 = vmatpush1.msra.mxu0 0.0
    %743 = vmatprep.subr.mxu0 0.0
    %744 = vmatpush1.msra.mxu0 0.0
    %745 = vmatprep.subr.mxu0 0.0
    %746 = vmatpush1.msra.mxu0 0.0
    %747 = vmatprep.subr.mxu0 0.0
    %748 = vmatpush1.msra.mxu0 0.0
    %749 = vmatprep.subr.mxu0 0.0
    %750 = vmatpush1.msra.mxu0 0.0
    %751 = vmatprep.subr.mxu0 0.0
    %752 = vmatpush1.msra.mxu0 0.0
    %753 = vmatprep.subr.mxu0 0.0
    %754 = vmatpush1.msra.mxu0 0.0
    %755 = vmatprep.subr.mxu0 0.0
    %756 = vmatpush1.msra.mxu0 0.0
    %757 = vmatprep.subr.mxu0 0.0
    %758 = vmatpush1.msra.mxu0 0.0
    %759 = vmatprep.mubr.f32.mxu0 0.0
    %760 = vmatmul.mubr.f32.gmra.mrb[0].mxu0 %v163
    %v761 = vpop.f32.mrb[0].mxu0
    %v762 = vadd.f32 0.0, %v761
    %v763 = vpop.f32.mrb[0].mxu0
    %v764 = vadd.f32 0.0, %v763
    %765 = vdwg.mxu0
    %v774 = vcombine.high %v76, %v76
    %v775 = vcombine.high %v77, %v77
    %v776 = vcombine.high %v78, %v78
    %v777 = vcombine.high %v79, %v79
    %v778 = vcombine.high %v80, %v80
    %v779 = vcombine.high %v81, %v81
    %v780 = vcombine.high %v82, %v82
    %v781 = vcombine.high %v83, %v83
    %vm782 = vcmask 31744
    %v784 = vsel %vm782, %v75, 0
    %vm786 = vcmask 1043456
    %v787 = vsel %vm786, %v76, 0
    %v789 = vsel %vm786, %v774, 0
    %v791 = vsel %vm786, %v77, 0
    %v793 = vsel %vm786, %v775, 0
    %v795 = vsel %vm786, %v78, 0
    %v797 = vsel %vm786, %v776, 0
    %v799 = vsel %vm786, %v79, 0
    %v801 = vsel %vm786, %v777, 0
    %v803 = vsel %vm786, %v80, 0
    %v805 = vsel %vm786, %v778, 0
    %v807 = vsel %vm786, %v81, 0
    %v809 = vsel %vm786, %v779, 0
    %v811 = vsel %vm786, %v82, 0
    %v813 = vsel %vm786, %v780, 0
    %v815 = vsel %vm786, %v83, 0
    %v817 = vsel %vm786, %v781, 0
    %819 = vmatprep.subr.mxu0 %v789
    %820 = vmatpush1.msra.mxu0 %v787
    %821 = vmatprep.subr.mxu0 0.0
    %822 = vmatpush1.msra.mxu0 0.0
    %823 = vmatprep.subr.mxu0 0.0
    %824 = vmatpush1.msra.mxu0 0.0
    %825 = vmatprep.subr.mxu0 0.0
    %826 = vmatpush1.msra.mxu0 0.0
    %827 = vmatprep.subr.mxu0 0.0
    %828 = vmatpush1.msra.mxu0 0.0
    %829 = vmatprep.subr.mxu0 0.0
    %830 = vmatpush1.msra.mxu0 0.0
    %831 = vmatprep.subr.mxu0 0.0
    %832 = vmatpush1.msra.mxu0 0.0
    %833 = vmatprep.subr.mxu0 0.0
    %834 = vmatpush1.msra.mxu0 0.0
    %835 = vmatprep.subr.mxu0 0.0
    %836 = vmatpush1.msra.mxu0 0.0
    %837 = vmatprep.subr.mxu0 0.0
    %838 = vmatpush1.msra.mxu0 0.0
    %839 = vmatprep.subr.mxu0 0.0
    %840 = vmatpush1.msra.mxu0 0.0
    %841 = vmatprep.subr.mxu0 0.0
    %842 = vmatpush1.msra.mxu0 0.0
    %843 = vmatprep.subr.mxu0 0.0
    %844 = vmatpush1.msra.mxu0 0.0
    %845 = vmatprep.subr.mxu0 0.0
    %846 = vmatpush1.msra.mxu0 0.0
    %847 = vmatprep.subr.mxu0 0.0
    %848 = vmatpush1.msra.mxu0 0.0
    %849 = vmatprep.subr.mxu0 0.0
    %850 = vmatpush1.msra.mxu0 0.0
    %851 = vmatprep.subr.mxu0 0.0
    %852 = vmatpush1.msra.mxu0 0.0
    %853 = vmatprep.subr.mxu0 0.0
    %854 = vmatpush1.msra.mxu0 0.0
    %855 = vmatprep.subr.mxu0 0.0
    %856 = vmatpush1.msra.mxu0 0.0
    %857 = vmatprep.subr.mxu0 0.0
    %858 = vmatpush1.msra.mxu0 0.0
    %859 = vmatprep.subr.mxu0 0.0
    %860 = vmatpush1.msra.mxu0 0.0
    %861 = vmatprep.subr.mxu0 0.0
    %862 = vmatpush1.msra.mxu0 0.0
    %863 = vmatprep.subr.mxu0 0.0
    %864 = vmatpush1.msra.mxu0 0.0
    %865 = vmatprep.subr.mxu0 0.0
    %866 = vmatpush1.msra.mxu0 0.0
    %867 = vmatprep.subr.mxu0 0.0
    %868 = vmatpush1.msra.mxu0 0.0
    %869 = vmatprep.subr.mxu0 0.0
    %870 = vmatpush1.msra.mxu0 0.0
    %871 = vmatprep.subr.mxu0 0.0
    %872 = vmatpush1.msra.mxu0 0.0
    %873 = vmatprep.subr.mxu0 0.0
    %874 = vmatpush1.msra.mxu0 0.0
    %875 = vmatprep.subr.mxu0 0.0
    %876 = vmatpush1.msra.mxu0 0.0
    %877 = vmatprep.subr.mxu0 0.0
    %878 = vmatpush1.msra.mxu0 0.0
    %879 = vmatprep.subr.mxu0 0.0
    %880 = vmatpush1.msra.mxu0 0.0
    %881 = vmatprep.subr.mxu0 0.0
    %882 = vmatpush1.msra.mxu0 0.0
    %883 = vmatprep.mubr.f32.mxu0 0.0
    %884 = vmatmul.mubr.f32.gmra.mrb[0].mxu0 %v784
    %v885 = vpop.f32.mrb[0].mxu0
    %v886 = vadd.f32 %v265, %v885
    %v887 = vpop.f32.mrb[0].mxu0
    %v888 = vadd.f32 %v267, %v887
    %889 = vdwg.mxu0
    %890 = vmatprep.subr.mxu0 %v793
    %891 = vmatpush1.msra.mxu0 %v791
    %892 = vmatprep.subr.mxu0 0.0
    %893 = vmatpush1.msra.mxu0 0.0
    %894 = vmatprep.subr.mxu0 0.0
    %895 = vmatpush1.msra.mxu0 0.0
    %896 = vmatprep.subr.mxu0 0.0
    %897 = vmatpush1.msra.mxu0 0.0
    %898 = vmatprep.subr.mxu0 0.0
    %899 = vmatpush1.msra.mxu0 0.0
    %900 = vmatprep.subr.mxu0 0.0
    %901 = vmatpush1.msra.mxu0 0.0
    %902 = vmatprep.subr.mxu0 0.0
    %903 = vmatpush1.msra.mxu0 0.0
    %904 = vmatprep.subr.mxu0 0.0
    %905 = vmatpush1.msra.mxu0 0.0
    %906 = vmatprep.subr.mxu0 0.0
    %907 = vmatpush1.msra.mxu0 0.0
    %908 = vmatprep.subr.mxu0 0.0
    %909 = vmatpush1.msra.mxu0 0.0
    %910 = vmatprep.subr.mxu0 0.0
    %911 = vmatpush1.msra.mxu0 0.0
    %912 = vmatprep.subr.mxu0 0.0
    %913 = vmatpush1.msra.mxu0 0.0
    %914 = vmatprep.subr.mxu0 0.0
    %915 = vmatpush1.msra.mxu0 0.0
    %916 = vmatprep.subr.mxu0 0.0
    %917 = vmatpush1.msra.mxu0 0.0
    %918 = vmatprep.subr.mxu0 0.0
    %919 = vmatpush1.msra.mxu0 0.0
    %920 = vmatprep.subr.mxu0 0.0
    %921 = vmatpush1.msra.mxu0 0.0
    %922 = vmatprep.subr.mxu0 0.0
    %923 = vmatpush1.msra.mxu0 0.0
    %924 = vmatprep.subr.mxu0 0.0
    %925 = vmatpush1.msra.mxu0 0.0
    %926 = vmatprep.subr.mxu0 0.0
    %927 = vmatpush1.msra.mxu0 0.0
    %928 = vmatprep.subr.mxu0 0.0
    %929 = vmatpush1.msra.mxu0 0.0
    %930 = vmatprep.subr.mxu0 0.0
    %931 = vmatpush1.msra.mxu0 0.0
    %932 = vmatprep.subr.mxu0 0.0
    %933 = vmatpush1.msra.mxu0 0.0
    %934 = vmatprep.subr.mxu0 0.0
    %935 = vmatpush1.msra.mxu0 0.0
    %936 = vmatprep.subr.mxu0 0.0
    %937 = vmatpush1.msra.mxu0 0.0
    %938 = vmatprep.subr.mxu0 0.0
    %939 = vmatpush1.msra.mxu0 0.0
    %940 = vmatprep.subr.mxu0 0.0
    %941 = vmatpush1.msra.mxu0 0.0
    %942 = vmatprep.subr.mxu0 0.0
    %943 = vmatpush1.msra.mxu0 0.0
    %944 = vmatprep.subr.mxu0 0.0
    %945 = vmatpush1.msra.mxu0 0.0
    %946 = vmatprep.subr.mxu0 0.0
    %947 = vmatpush1.msra.mxu0 0.0
    %948 = vmatprep.subr.mxu0 0.0
    %949 = vmatpush1.msra.mxu0 0.0
    %950 = vmatprep.subr.mxu0 0.0
    %951 = vmatpush1.msra.mxu0 0.0
    %952 = vmatprep.subr.mxu0 0.0
    %953 = vmatpush1.msra.mxu0 0.0
    %954 = vmatprep.mubr.f32.mxu0 0.0
    %955 = vmatmul.mubr.f32.gmra.mrb[0].mxu0 %v784
    %v956 = vpop.f32.mrb[0].mxu0
    %v957 = vadd.f32 %v336, %v956
    %v958 = vpop.f32.mrb[0].mxu0
    %v959 = vadd.f32 %v338, %v958
    %960 = vdwg.mxu0
    %961 = vmatprep.subr.mxu0 %v797
    %962 = vmatpush1.msra.mxu0 %v795
    %963 = vmatprep.subr.mxu0 0.0
    %964 = vmatpush1.msra.mxu0 0.0
    %965 = vmatprep.subr.mxu0 0.0
    %966 = vmatpush1.msra.mxu0 0.0
    %967 = vmatprep.subr.mxu0 0.0
    %968 = vmatpush1.msra.mxu0 0.0
    %969 = vmatprep.subr.mxu0 0.0
    %970 = vmatpush1.msra.mxu0 0.0
    %971 = vmatprep.subr.mxu0 0.0
    %972 = vmatpush1.msra.mxu0 0.0
    %973 = vmatprep.subr.mxu0 0.0
    %974 = vmatpush1.msra.mxu0 0.0
    %975 = vmatprep.subr.mxu0 0.0
    %976 = vmatpush1.msra.mxu0 0.0
    %977 = vmatprep.subr.mxu0 0.0
    %978 = vmatpush1.msra.mxu0 0.0
    %979 = vmatprep.subr.mxu0 0.0
    %980 = vmatpush1.msra.mxu0 0.0
    %981 = vmatprep.subr.mxu0 0.0
    %982 = vmatpush1.msra.mxu0 0.0
    %983 = vmatprep.subr.mxu0 0.0
    %984 = vmatpush1.msra.mxu0 0.0
    %985 = vmatprep.subr.mxu0 0.0
    %986 = vmatpush1.msra.mxu0 0.0
    %987 = vmatprep.subr.mxu0 0.0
    %988 = vmatpush1.msra.mxu0 0.0
    %989 = vmatprep.subr.mxu0 0.0
    %990 = vmatpush1.msra.mxu0 0.0
    %991 = vmatprep.subr.mxu0 0.0
    %992 = vmatpush1.msra.mxu0 0.0
    %993 = vmatprep.subr.mxu0 0.0
    %994 = vmatpush1.msra.mxu0 0.0
    %995 = vmatprep.subr.mxu0 0.0
    %996 = vmatpush1.msra.mxu0 0.0
    %997 = vmatprep.subr.mxu0 0.0
    %998 = vmatpush1.msra.mxu0 0.0
    %999 = vmatprep.subr.mxu0 0.0
    %1000 = vmatpush1.msra.mxu0 0.0
    %1001 = vmatprep.subr.mxu0 0.0
    %1002 = vmatpush1.msra.mxu0 0.0
    %1003 = vmatprep.subr.mxu0 0.0
    %1004 = vmatpush1.msra.mxu0 0.0
    %1005 = vmatprep.subr.mxu0 0.0
    %1006 = vmatpush1.msra.mxu0 0.0
    %1007 = vmatprep.subr.mxu0 0.0
    %1008 = vmatpush1.msra.mxu0 0.0
    %1009 = vmatprep.subr.mxu0 0.0
    %1010 = vmatpush1.msra.mxu0 0.0
    %1011 = vmatprep.subr.mxu0 0.0
    %1012 = vmatpush1.msra.mxu0 0.0
    %1013 = vmatprep.subr.mxu0 0.0
    %1014 = vmatpush1.msra.mxu0 0.0
    %1015 = vmatprep.subr.mxu0 0.0
    %1016 = vmatpush1.msra.mxu0 0.0
    %1017 = vmatprep.subr.mxu0 0.0
    %1018 = vmatpush1.msra.mxu0 0.0
    %1019 = vmatprep.subr.mxu0 0.0
    %1020 = vmatpush1.msra.mxu0 0.0
    %1021 = vmatprep.subr.mxu0 0.0
    %1022 = vmatpush1.msra.mxu0 0.0
    %1023 = vmatprep.subr.mxu0 0.0
    %1024 = vmatpush1.msra.mxu0 0.0
    %1025 = vmatprep.mubr.f32.mxu0 0.0
    %1026 = vmatmul.mubr.f32.gmra.mrb[0].mxu0 %v784
    %v1027 = vpop.f32.mrb[0].mxu0
    %v1028 = vadd.f32 %v407, %v1027
    %v1029 = vpop.f32.mrb[0].mxu0
    %v1030 = vadd.f32 %v409, %v1029
    %1031 = vdwg.mxu0
    %1032 = vmatprep.subr.mxu0 %v801
    %1033 = vmatpush1.msra.mxu0 %v799
    %1034 = vmatprep.subr.mxu0 0.0
    %1035 = vmatpush1.msra.mxu0 0.0
    %1036 = vmatprep.subr.mxu0 0.0
    %1037 = vmatpush1.msra.mxu0 0.0
    %1038 = vmatprep.subr.mxu0 0.0
    %1039 = vmatpush1.msra.mxu0 0.0
    %1040 = vmatprep.subr.mxu0 0.0
    %1041 = vmatpush1.msra.mxu0 0.0
    %1042 = vmatprep.subr.mxu0 0.0
    %1043 = vmatpush1.msra.mxu0 0.0
    %1044 = vmatprep.subr.mxu0 0.0
    %1045 = vmatpush1.msra.mxu0 0.0
    %1046 = vmatprep.subr.mxu0 0.0
    %1047 = vmatpush1.msra.mxu0 0.0
    %1048 = vmatprep.subr.mxu0 0.0
    %1049 = vmatpush1.msra.mxu0 0.0
    %1050 = vmatprep.subr.mxu0 0.0
    %1051 = vmatpush1.msra.mxu0 0.0
    %1052 = vmatprep.subr.mxu0 0.0
    %1053 = vmatpush1.msra.mxu0 0.0
    %1054 = vmatprep.subr.mxu0 0.0
    %1055 = vmatpush1.msra.mxu0 0.0
    %1056 = vmatprep.subr.mxu0 0.0
    %1057 = vmatpush1.msra.mxu0 0.0
    %1058 = vmatprep.subr.mxu0 0.0
    %1059 = vmatpush1.msra.mxu0 0.0
    %1060 = vmatprep.subr.mxu0 0.0
    %1061 = vmatpush1.msra.mxu0 0.0
    %1062 = vmatprep.subr.mxu0 0.0
    %1063 = vmatpush1.msra.mxu0 0.0
    %1064 = vmatprep.subr.mxu0 0.0
    %1065 = vmatpush1.msra.mxu0 0.0
    %1066 = vmatprep.subr.mxu0 0.0
    %1067 = vmatpush1.msra.mxu0 0.0
    %1068 = vmatprep.subr.mxu0 0.0
    %1069 = vmatpush1.msra.mxu0 0.0
    %1070 = vmatprep.subr.mxu0 0.0
    %1071 = vmatpush1.msra.mxu0 0.0
    %1072 = vmatprep.subr.mxu0 0.0
    %1073 = vmatpush1.msra.mxu0 0.0
    %1074 = vmatprep.subr.mxu0 0.0
    %1075 = vmatpush1.msra.mxu0 0.0
    %1076 = vmatprep.subr.mxu0 0.0
    %1077 = vmatpush1.msra.mxu0 0.0
    %1078 = vmatprep.subr.mxu0 0.0
    %1079 = vmatpush1.msra.mxu0 0.0
    %1080 = vmatprep.subr.mxu0 0.0
    %1081 = vmatpush1.msra.mxu0 0.0
    %1082 = vmatprep.subr.mxu0 0.0
    %1083 = vmatpush1.msra.mxu0 0.0
    %1084 = vmatprep.subr.mxu0 0.0
    %1085 = vmatpush1.msra.mxu0 0.0
    %1086 = vmatprep.subr.mxu0 0.0
    %1087 = vmatpush1.msra.mxu0 0.0
    %1088 = vmatprep.subr.mxu0 0.0
    %1089 = vmatpush1.msra.mxu0 0.0
    %1090 = vmatprep.subr.mxu0 0.0
    %1091 = vmatpush1.msra.mxu0 0.0
    %1092 = vmatprep.subr.mxu0 0.0
    %1093 = vmatpush1.msra.mxu0 0.0
    %1094 = vmatprep.subr.mxu0 0.0
    %1095 = vmatpush1.msra.mxu0 0.0
    %1096 = vmatprep.mubr.f32.mxu0 0.0
    %1097 = vmatmul.mubr.f32.gmra.mrb[0].mxu0 %v784
    %v1098 = vpop.f32.mrb[0].mxu0
    %v1099 = vadd.f32 %v478, %v1098
    %v1100 = vpop.f32.mrb[0].mxu0
    %v1101 = vadd.f32 %v480, %v1100
    %1102 = vdwg.mxu0
    %1103 = vmatprep.subr.mxu0 %v805
    %1104 = vmatpush1.msra.mxu0 %v803
    %1105 = vmatprep.subr.mxu0 0.0
    %1106 = vmatpush1.msra.mxu0 0.0
    %1107 = vmatprep.subr.mxu0 0.0
    %1108 = vmatpush1.msra.mxu0 0.0
    %1109 = vmatprep.subr.mxu0 0.0
    %1110 = vmatpush1.msra.mxu0 0.0
    %1111 = vmatprep.subr.mxu0 0.0
    %1112 = vmatpush1.msra.mxu0 0.0
    %1113 = vmatprep.subr.mxu0 0.0
    %1114 = vmatpush1.msra.mxu0 0.0
    %1115 = vmatprep.subr.mxu0 0.0
    %1116 = vmatpush1.msra.mxu0 0.0
    %1117 = vmatprep.subr.mxu0 0.0
    %1118 = vmatpush1.msra.mxu0 0.0
    %1119 = vmatprep.subr.mxu0 0.0
    %1120 = vmatpush1.msra.mxu0 0.0
    %1121 = vmatprep.subr.mxu0 0.0
    %1122 = vmatpush1.msra.mxu0 0.0
    %1123 = vmatprep.subr.mxu0 0.0
    %1124 = vmatpush1.msra.mxu0 0.0
    %1125 = vmatprep.subr.mxu0 0.0
    %1126 = vmatpush1.msra.mxu0 0.0
    %1127 = vmatprep.subr.mxu0 0.0
    %1128 = vmatpush1.msra.mxu0 0.0
    %1129 = vmatprep.subr.mxu0 0.0
    %1130 = vmatpush1.msra.mxu0 0.0
    %1131 = vmatprep.subr.mxu0 0.0
    %1132 = vmatpush1.msra.mxu0 0.0
    %1133 = vmatprep.subr.mxu0 0.0
    %1134 = vmatpush1.msra.mxu0 0.0
    %1135 = vmatprep.subr.mxu0 0.0
    %1136 = vmatpush1.msra.mxu0 0.0
    %1137 = vmatprep.subr.mxu0 0.0
    %1138 = vmatpush1.msra.mxu0 0.0
    %1139 = vmatprep.subr.mxu0 0.0
    %1140 = vmatpush1.msra.mxu0 0.0
    %1141 = vmatprep.subr.mxu0 0.0
    %1142 = vmatpush1.msra.mxu0 0.0
    %1143 = vmatprep.subr.mxu0 0.0
    %1144 = vmatpush1.msra.mxu0 0.0
    %1145 = vmatprep.subr.mxu0 0.0
    %1146 = vmatpush1.msra.mxu0 0.0
    %1147 = vmatprep.subr.mxu0 0.0
    %1148 = vmatpush1.msra.mxu0 0.0
    %1149 = vmatprep.subr.mxu0 0.0
    %1150 = vmatpush1.msra.mxu0 0.0
    %1151 = vmatprep.subr.mxu0 0.0
    %1152 = vmatpush1.msra.mxu0 0.0
    %1153 = vmatprep.subr.mxu0 0.0
    %1154 = vmatpush1.msra.mxu0 0.0
    %1155 = vmatprep.subr.mxu0 0.0
    %1156 = vmatpush1.msra.mxu0 0.0
    %1157 = vmatprep.subr.mxu0 0.0
    %1158 = vmatpush1.msra.mxu0 0.0
    %1159 = vmatprep.subr.mxu0 0.0
    %1160 = vmatpush1.msra.mxu0 0.0
    %1161 = vmatprep.subr.mxu0 0.0
    %1162 = vmatpush1.msra.mxu0 0.0
    %1163 = vmatprep.subr.mxu0 0.0
    %1164 = vmatpush1.msra.mxu0 0.0
    %1165 = vmatprep.subr.mxu0 0.0
    %1166 = vmatpush1.msra.mxu0 0.0
    %1167 = vmatprep.mubr.f32.mxu0 0.0
    %1168 = vmatmul.mubr.f32.gmra.mrb[0].mxu0 %v784
    %v1169 = vpop.f32.mrb[0].mxu0
    %v1170 = vadd.f32 %v549, %v1169
    %v1171 = vpop.f32.mrb[0].mxu0
    %v1172 = vadd.f32 %v551, %v1171
    %1173 = vdwg.mxu0
    %1174 = vmatprep.subr.mxu0 %v809
    %1175 = vmatpush1.msra.mxu0 %v807
    %1176 = vmatprep.subr.mxu0 0.0
    %1177 = vmatpush1.msra.mxu0 0.0
    %1178 = vmatprep.subr.mxu0 0.0
    %1179 = vmatpush1.msra.mxu0 0.0
    %1180 = vmatprep.subr.mxu0 0.0
    %1181 = vmatpush1.msra.mxu0 0.0
    %1182 = vmatprep.subr.mxu0 0.0
    %1183 = vmatpush1.msra.mxu0 0.0
    %1184 = vmatprep.subr.mxu0 0.0
    %1185 = vmatpush1.msra.mxu0 0.0
    %1186 = vmatprep.subr.mxu0 0.0
    %1187 = vmatpush1.msra.mxu0 0.0
    %1188 = vmatprep.subr.mxu0 0.0
    %1189 = vmatpush1.msra.mxu0 0.0
    %1190 = vmatprep.subr.mxu0 0.0
    %1191 = vmatpush1.msra.mxu0 0.0
    %1192 = vmatprep.subr.mxu0 0.0
    %1193 = vmatpush1.msra.mxu0 0.0
    %1194 = vmatprep.subr.mxu0 0.0
    %1195 = vmatpush1.msra.mxu0 0.0
    %1196 = vmatprep.subr.mxu0 0.0
    %1197 = vmatpush1.msra.mxu0 0.0
    %1198 = vmatprep.subr.mxu0 0.0
    %1199 = vmatpush1.msra.mxu0 0.0
    %1200 = vmatprep.subr.mxu0 0.0
    %1201 = vmatpush1.msra.mxu0 0.0
    %1202 = vmatprep.subr.mxu0 0.0
    %1203 = vmatpush1.msra.mxu0 0.0
    %1204 = vmatprep.subr.mxu0 0.0
    %1205 = vmatpush1.msra.mxu0 0.0
    %1206 = vmatprep.subr.mxu0 0.0
    %1207 = vmatpush1.msra.mxu0 0.0
    %1208 = vmatprep.subr.mxu0 0.0
    %1209 = vmatpush1.msra.mxu0 0.0
    %1210 = vmatprep.subr.mxu0 0.0
    %1211 = vmatpush1.msra.mxu0 0.0
    %1212 = vmatprep.subr.mxu0 0.0
    %1213 = vmatpush1.msra.mxu0 0.0
    %1214 = vmatprep.subr.mxu0 0.0
    %1215 = vmatpush1.msra.mxu0 0.0
    %1216 = vmatprep.subr.mxu0 0.0
    %1217 = vmatpush1.msra.mxu0 0.0
    %1218 = vmatprep.subr.mxu0 0.0
    %1219 = vmatpush1.msra.mxu0 0.0
    %1220 = vmatprep.subr.mxu0 0.0
    %1221 = vmatpush1.msra.mxu0 0.0
    %1222 = vmatprep.subr.mxu0 0.0
    %1223 = vmatpush1.msra.mxu0 0.0
    %1224 = vmatprep.subr.mxu0 0.0
    %1225 = vmatpush1.msra.mxu0 0.0
    %1226 = vmatprep.subr.mxu0 0.0
    %1227 = vmatpush1.msra.mxu0 0.0
    %1228 = vmatprep.subr.mxu0 0.0
    %1229 = vmatpush1.msra.mxu0 0.0
    %1230 = vmatprep.subr.mxu0 0.0
    %1231 = vmatpush1.msra.mxu0 0.0
    %1232 = vmatprep.subr.mxu0 0.0
    %1233 = vmatpush1.msra.mxu0 0.0
    %1234 = vmatprep.subr.mxu0 0.0
    %1235 = vmatpush1.msra.mxu0 0.0
    %1236 = vmatprep.subr.mxu0 0.0
    %1237 = vmatpush1.msra.mxu0 0.0
    %1238 = vmatprep.mubr.f32.mxu0 0.0
    %1239 = vmatmul.mubr.f32.gmra.mrb[0].mxu0 %v784
    %v1240 = vpop.f32.mrb[0].mxu0
    %v1241 = vadd.f32 %v620, %v1240
    %v1242 = vpop.f32.mrb[0].mxu0
    %v1243 = vadd.f32 %v622, %v1242
    %1244 = vdwg.mxu0
    %1245 = vmatprep.subr.mxu0 %v813
    %1246 = vmatpush1.msra.mxu0 %v811
    %1247 = vmatprep.subr.mxu0 0.0
    %1248 = vmatpush1.msra.mxu0 0.0
    %1249 = vmatprep.subr.mxu0 0.0
    %1250 = vmatpush1.msra.mxu0 0.0
    %1251 = vmatprep.subr.mxu0 0.0
    %1252 = vmatpush1.msra.mxu0 0.0
    %1253 = vmatprep.subr.mxu0 0.0
    %1254 = vmatpush1.msra.mxu0 0.0
    %1255 = vmatprep.subr.mxu0 0.0
    %1256 = vmatpush1.msra.mxu0 0.0
    %1257 = vmatprep.subr.mxu0 0.0
    %1258 = vmatpush1.msra.mxu0 0.0
    %1259 = vmatprep.subr.mxu0 0.0
    %1260 = vmatpush1.msra.mxu0 0.0
    %1261 = vmatprep.subr.mxu0 0.0
    %1262 = vmatpush1.msra.mxu0 0.0
    %1263 = vmatprep.subr.mxu0 0.0
    %1264 = vmatpush1.msra.mxu0 0.0
    %1265 = vmatprep.subr.mxu0 0.0
    %1266 = vmatpush1.msra.mxu0 0.0
    %1267 = vmatprep.subr.mxu0 0.0
    %1268 = vmatpush1.msra.mxu0 0.0
    %1269 = vmatprep.subr.mxu0 0.0
    %1270 = vmatpush1.msra.mxu0 0.0
    %1271 = vmatprep.subr.mxu0 0.0
    %1272 = vmatpush1.msra.mxu0 0.0
    %1273 = vmatprep.subr.mxu0 0.0
    %1274 = vmatpush1.msra.mxu0 0.0
    %1275 = vmatprep.subr.mxu0 0.0
    %1276 = vmatpush1.msra.mxu0 0.0
    %1277 = vmatprep.subr.mxu0 0.0
    %1278 = vmatpush1.msra.mxu0 0.0
    %1279 = vmatprep.subr.mxu0 0.0
    %1280 = vmatpush1.msra.mxu0 0.0
    %1281 = vmatprep.subr.mxu0 0.0
    %1282 = vmatpush1.msra.mxu0 0.0
    %1283 = vmatprep.subr.mxu0 0.0
    %1284 = vmatpush1.msra.mxu0 0.0
    %1285 = vmatprep.subr.mxu0 0.0
    %1286 = vmatpush1.msra.mxu0 0.0
    %1287 = vmatprep.subr.mxu0 0.0
    %1288 = vmatpush1.msra.mxu0 0.0
    %1289 = vmatprep.subr.mxu0 0.0
    %1290 = vmatpush1.msra.mxu0 0.0
    %1291 = vmatprep.subr.mxu0 0.0
    %1292 = vmatpush1.msra.mxu0 0.0
    %1293 = vmatprep.subr.mxu0 0.0
    %1294 = vmatpush1.msra.mxu0 0.0
    %1295 = vmatprep.subr.mxu0 0.0
    %1296 = vmatpush1.msra.mxu0 0.0
    %1297 = vmatprep.subr.mxu0 0.0
    %1298 = vmatpush1.msra.mxu0 0.0
    %1299 = vmatprep.subr.mxu0 0.0
    %1300 = vmatpush1.msra.mxu0 0.0
    %1301 = vmatprep.subr.mxu0 0.0
    %1302 = vmatpush1.msra.mxu0 0.0
    %1303 = vmatprep.subr.mxu0 0.0
    %1304 = vmatpush1.msra.mxu0 0.0
    %1305 = vmatprep.subr.mxu0 0.0
    %1306 = vmatpush1.msra.mxu0 0.0
    %1307 = vmatprep.subr.mxu0 0.0
    %1308 = vmatpush1.msra.mxu0 0.0
    %1309 = vmatprep.mubr.f32.mxu0 0.0
    %1310 = vmatmul.mubr.f32.gmra.mrb[0].mxu0 %v784
    %v1311 = vpop.f32.mrb[0].mxu0
    %v1312 = vadd.f32 %v691, %v1311
    %v1313 = vpop.f32.mrb[0].mxu0
    %v1314 = vadd.f32 %v693, %v1313
    %1315 = vdwg.mxu0
    %1316 = vmatprep.subr.mxu0 %v817
    %1317 = vmatpush1.msra.mxu0 %v815
    %1318 = vmatprep.subr.mxu0 0.0
    %1319 = vmatpush1.msra.mxu0 0.0
    %1320 = vmatprep.subr.mxu0 0.0
    %1321 = vmatpush1.msra.mxu0 0.0
    %1322 = vmatprep.subr.mxu0 0.0
    %1323 = vmatpush1.msra.mxu0 0.0
    %1324 = vmatprep.subr.mxu0 0.0
    %1325 = vmatpush1.msra.mxu0 0.0
    %1326 = vmatprep.subr.mxu0 0.0
    %1327 = vmatpush1.msra.mxu0 0.0
    %1328 = vmatprep.subr.mxu0 0.0
    %1329 = vmatpush1.msra.mxu0 0.0
    %1330 = vmatprep.subr.mxu0 0.0
    %1331 = vmatpush1.msra.mxu0 0.0
    %1332 = vmatprep.subr.mxu0 0.0
    %1333 = vmatpush1.msra.mxu0 0.0
    %1334 = vmatprep.subr.mxu0 0.0
    %1335 = vmatpush1.msra.mxu0 0.0
    %1336 = vmatprep.subr.mxu0 0.0
    %1337 = vmatpush1.msra.mxu0 0.0
    %1338 = vmatprep.subr.mxu0 0.0
    %1339 = vmatpush1.msra.mxu0 0.0
    %1340 = vmatprep.subr.mxu0 0.0
    %1341 = vmatpush1.msra.mxu0 0.0
    %1342 = vmatprep.subr.mxu0 0.0
    %1343 = vmatpush1.msra.mxu0 0.0
    %1344 = vmatprep.subr.mxu0 0.0
    %1345 = vmatpush1.msra.mxu0 0.0
    %1346 = vmatprep.subr.mxu0 0.0
    %1347 = vmatpush1.msra.mxu0 0.0
    %1348 = vmatprep.subr.mxu0 0.0
    %1349 = vmatpush1.msra.mxu0 0.0
    %1350 = vmatprep.subr.mxu0 0.0
    %1351 = vmatpush1.msra.mxu0 0.0
    %1352 = vmatprep.subr.mxu0 0.0
    %1353 = vmatpush1.msra.mxu0 0.0
    %1354 = vmatprep.subr.mxu0 0.0
    %1355 = vmatpush1.msra.mxu0 0.0
    %1356 = vmatprep.subr.mxu0 0.0
    %1357 = vmatpush1.msra.mxu0 0.0
    %1358 = vmatprep.subr.mxu0 0.0
    %1359 = vmatpush1.msra.mxu0 0.0
    %1360 = vmatprep.subr.mxu0 0.0
    %1361 = vmatpush1.msra.mxu0 0.0
    %1362 = vmatprep.subr.mxu0 0.0
    %1363 = vmatpush1.msra.mxu0 0.0
    %1364 = vmatprep.subr.mxu0 0.0
    %1365 = vmatpush1.msra.mxu0 0.0
    %1366 = vmatprep.subr.mxu0 0.0
    %1367 = vmatpush1.msra.mxu0 0.0
    %1368 = vmatprep.subr.mxu0 0.0
    %1369 = vmatpush1.msra.mxu0 0.0
    %1370 = vmatprep.subr.mxu0 0.0
    %1371 = vmatpush1.msra.mxu0 0.0
    %1372 = vmatprep.subr.mxu0 0.0
    %1373 = vmatpush1.msra.mxu0 0.0
    %1374 = vmatprep.subr.mxu0 0.0
    %1375 = vmatpush1.msra.mxu0 0.0
    %1376 = vmatprep.subr.mxu0 0.0
    %1377 = vmatpush1.msra.mxu0 0.0
    %1378 = vmatprep.subr.mxu0 0.0
    %1379 = vmatpush1.msra.mxu0 0.0
    %1380 = vmatprep.mubr.f32.mxu0 0.0
    %1381 = vmatmul.mubr.f32.gmra.mrb[0].mxu0 %v784
    %v1382 = vpop.f32.mrb[0].mxu0
    %v1383 = vadd.f32 %v762, %v1382
    %v1384 = vpop.f32.mrb[0].mxu0
    %v1385 = vadd.f32 %v764, %v1384
    %1386 = vdwg.mxu0
    %v1387 = vld [vmem:[#allocation7] sm:$0xff]
    %v1388 = vld [vmem:[#allocation7 + $0x8] sm:$0xff]
    %v1391 = vlaneseq
    %v1392 = vshrl.u32 %v1391, 7
    %v1393 = vsub.s32 0, %v1392
    %v1394 = vrot.slane %v1387, %v1393
    %v1395 = vlaneseq
    %v1396 = vshrl.u32 %v1395, 7
    %v1397 = vsub.s32 1, %v1396
    %v1398 = vrot.slane %v1387, %v1397
    %v1399 = vlaneseq
    %v1400 = vshrl.u32 %v1399, 7
    %v1401 = vsub.s32 2, %v1400
    %v1402 = vrot.slane %v1387, %v1401
    %v1403 = vlaneseq
    %v1404 = vshrl.u32 %v1403, 7
    %v1405 = vsub.s32 3, %v1404
    %v1406 = vrot.slane %v1387, %v1405
    %v1407 = vlaneseq
    %v1408 = vshrl.u32 %v1407, 7
    %v1409 = vsub.s32 4, %v1408
    %v1410 = vrot.slane %v1387, %v1409
    %v1411 = vlaneseq
    %v1412 = vshrl.u32 %v1411, 7
    %v1413 = vsub.s32 5, %v1412
    %v1414 = vrot.slane %v1387, %v1413
    %v1415 = vlaneseq
    %v1416 = vshrl.u32 %v1415, 7
    %v1417 = vsub.s32 6, %v1416
    %v1418 = vrot.slane %v1387, %v1417
    %v1419 = vlaneseq
    %v1420 = vshrl.u32 %v1419, 7
    %v1421 = vsub.s32 7, %v1420
    %v1422 = vrot.slane %v1387, %v1421
    %v1423 = vlaneseq
    %v1424 = vshrl.u32 %v1423, 7
    %v1425 = vsub.s32 0, %v1424
    %v1426 = vrot.slane %v1388, %v1425
    %v1427 = vlaneseq
    %v1428 = vshrl.u32 %v1427, 7
    %v1429 = vsub.s32 1, %v1428
    %v1430 = vrot.slane %v1388, %v1429
    %v1431 = vlaneseq
    %v1432 = vshrl.u32 %v1431, 7
    %v1433 = vsub.s32 2, %v1432
    %v1434 = vrot.slane %v1388, %v1433
    %v1435 = vlaneseq
    %v1436 = vshrl.u32 %v1435, 7
    %v1437 = vsub.s32 3, %v1436
    %v1438 = vrot.slane %v1388, %v1437
    %v1439 = vlaneseq
    %v1440 = vshrl.u32 %v1439, 7
    %v1441 = vsub.s32 4, %v1440
    %v1442 = vrot.slane %v1388, %v1441
    %v1443 = vlaneseq
    %v1444 = vshrl.u32 %v1443, 7
    %v1445 = vsub.s32 5, %v1444
    %v1446 = vrot.slane %v1388, %v1445
    %v1447 = vlaneseq
    %v1448 = vshrl.u32 %v1447, 7
    %v1449 = vsub.s32 6, %v1448
    %v1450 = vrot.slane %v1388, %v1449
    %v1451 = vlaneseq
    %v1452 = vshrl.u32 %v1451, 7
    %v1453 = vsub.s32 7, %v1452
    %v1454 = vrot.slane %v1388, %v1453
    %v1471 = vadd.f32 %v886, %v1394
    %v1472 = vadd.f32 %v888, %v1398
    %v1473 = vadd.f32 %v957, %v1402
    %v1474 = vadd.f32 %v959, %v1406
    %v1475 = vadd.f32 %v1028, %v1410
    %v1476 = vadd.f32 %v1030, %v1414
    %v1477 = vadd.f32 %v1099, %v1418
    %v1478 = vadd.f32 %v1101, %v1422
    %v1479 = vadd.f32 %v1170, %v1426
    %v1480 = vadd.f32 %v1172, %v1430
    %v1481 = vadd.f32 %v1241, %v1434
    %v1482 = vadd.f32 %v1243, %v1438
    %v1483 = vadd.f32 %v1312, %v1442
    %v1484 = vadd.f32 %v1314, %v1446
    %v1485 = vadd.f32 %v1383, %v1450
    %v1486 = vadd.f32 %v1385, %v1454
    %v1487 = vmax.f32 %v1471, 0.0
    %v1488 = vmax.f32 %v1472, 0.0
    %v1489 = vmax.f32 %v1473, 0.0
    %v1490 = vmax.f32 %v1474, 0.0
    %v1491 = vmax.f32 %v1475, 0.0
    %v1492 = vmax.f32 %v1476, 0.0
    %v1493 = vmax.f32 %v1477, 0.0
    %v1494 = vmax.f32 %v1478, 0.0
    %v1495 = vmax.f32 %v1479, 0.0
    %v1496 = vmax.f32 %v1480, 0.0
    %v1497 = vmax.f32 %v1481, 0.0
    %v1498 = vmax.f32 %v1482, 0.0
    %v1499 = vmax.f32 %v1483, 0.0
    %v1500 = vmax.f32 %v1484, 0.0
    %v1501 = vmax.f32 %v1485, 0.0
    %v1502 = vmax.f32 %v1486, 0.0
    %v1503 = vld [vmem:[%s5] ss:$2 sm:$0xff]
    %v1505 = vlaneseq
    %v1506 = vshrl.u32 %v1505, 7
    %v1507 = vsub.s32 0, %v1506
    %v1508 = vrot.slane %v1503, %v1507
    %v1509 = vlaneseq
    %v1510 = vshrl.u32 %v1509, 7
    %v1511 = vsub.s32 1, %v1510
    %v1512 = vrot.slane %v1503, %v1511
    %v1513 = vlaneseq
    %v1514 = vshrl.u32 %v1513, 7
    %v1515 = vsub.s32 2, %v1514
    %v1516 = vrot.slane %v1503, %v1515
    %v1517 = vlaneseq
    %v1518 = vshrl.u32 %v1517, 7
    %v1519 = vsub.s32 3, %v1518
    %v1520 = vrot.slane %v1503, %v1519
    %v1521 = vlaneseq
    %v1522 = vshrl.u32 %v1521, 7
    %v1523 = vsub.s32 4, %v1522
    %v1524 = vrot.slane %v1503, %v1523
    %v1525 = vlaneseq
    %v1526 = vshrl.u32 %v1525, 7
    %v1527 = vsub.s32 5, %v1526
    %v1528 = vrot.slane %v1503, %v1527
    %v1529 = vlaneseq
    %v1530 = vshrl.u32 %v1529, 7
    %v1531 = vsub.s32 6, %v1530
    %v1532 = vrot.slane %v1503, %v1531
    %v1533 = vlaneseq
    %v1534 = vshrl.u32 %v1533, 7
    %v1535 = vsub.s32 7, %v1534
    %v1536 = vrot.slane %v1503, %v1535
    %v1545 = vmul.f32 %v1487, %v1508
    %v1546 = vmul.f32 %v1488, %v1512
    %v1547 = vmul.f32 %v1489, %v1516
    %v1548 = vmul.f32 %v1490, %v1520
    %v1549 = vmul.f32 %v1491, %v1524
    %v1550 = vmul.f32 %v1492, %v1528
    %v1551 = vmul.f32 %v1493, %v1532
    %v1552 = vmul.f32 %v1494, %v1536
    %v1553 = vsel %vm165, %v1545, 0.0
    %v1554 = vsel %vm165, %v1546, 0.0
    %v1555 = vadd.f32 %v1553, %v1554
    %v1556 = vsel %vm165, %v1547, 0.0
    %v1557 = vadd.f32 %v1555, %v1556
    %v1558 = vsel %vm165, %v1548, 0.0
    %v1559 = vadd.f32 %v1557, %v1558
    %v1560 = vsel %vm165, %v1549, 0.0
    %v1561 = vadd.f32 %v1559, %v1560
    %v1562 = vsel %vm165, %v1550, 0.0
    %v1563 = vadd.f32 %v1561, %v1562
    %v1564 = vsel %vm165, %v1551, 0.0
    %v1565 = vadd.f32 %v1563, %v1564
    %v1566 = vsel %vm165, %v1552, 0.0
    %v1567 = vadd.f32 %v1565, %v1566
    %1568 = vadd.xlane.f32.xlu0 %v1567
    %v1569 = vpop.xlane.xlu0 %1568
    %v1570 = vld [vmem:[%s6] sm:$0x1]
    %v1572 = vlaneseq
    %v1573 = vshrl.u32 %v1572, 7
    %v1574 = vsub.s32 0, %v1573
    %v1575 = vrot.slane %v1570, %v1574
    %v1577 = vadd.f32 %v1569, %v1575
    %vm1578 = vcmask 1024
    %1579 = vst.msk [vmem:[%s7] sm:$0x3] %vm1578, %v1577
    %s1580 = scalar_lea.vmem %s5, 1
    %v1581 = vld [vmem:[%s1580] ss:$2 sm:$0xff]
    %v1583 = vlaneseq
    %v1584 = vshrl.u32 %v1583, 7
    %v1585 = vsub.s32 0, %v1584
    %v1586 = vrot.slane %v1581, %v1585
    %v1587 = vlaneseq
    %v1588 = vshrl.u32 %v1587, 7
    %v1589 = vsub.s32 1, %v1588
    %v1590 = vrot.slane %v1581, %v1589
    %v1591 = vlaneseq
    %v1592 = vshrl.u32 %v1591, 7
    %v1593 = vsub.s32 2, %v1592
    %v1594 = vrot.slane %v1581, %v1593
    %v1595 = vlaneseq
    %v1596 = vshrl.u32 %v1595, 7
    %v1597 = vsub.s32 3, %v1596
    %v1598 = vrot.slane %v1581, %v1597
    %v1599 = vlaneseq
    %v1600 = vshrl.u32 %v1599, 7
    %v1601 = vsub.s32 4, %v1600
    %v1602 = vrot.slane %v1581, %v1601
    %v1603 = vlaneseq
    %v1604 = vshrl.u32 %v1603, 7
    %v1605 = vsub.s32 5, %v1604
    %v1606 = vrot.slane %v1581, %v1605
    %v1607 = vlaneseq
    %v1608 = vshrl.u32 %v1607, 7
    %v1609 = vsub.s32 6, %v1608
    %v1610 = vrot.slane %v1581, %v1609
    %v1611 = vlaneseq
    %v1612 = vshrl.u32 %v1611, 7
    %v1613 = vsub.s32 7, %v1612
    %v1614 = vrot.slane %v1581, %v1613
    %v1623 = vmul.f32 %v1495, %v1586
    %v1624 = vmul.f32 %v1496, %v1590
    %v1625 = vmul.f32 %v1497, %v1594
    %v1626 = vmul.f32 %v1498, %v1598
    %v1627 = vmul.f32 %v1499, %v1602
    %v1628 = vmul.f32 %v1500, %v1606
    %v1629 = vmul.f32 %v1501, %v1610
    %v1630 = vmul.f32 %v1502, %v1614
    %v1631 = vsel %vm165, %v1623, 0.0
    %v1632 = vsel %vm165, %v1624, 0.0
    %v1633 = vadd.f32 %v1631, %v1632
    %v1634 = vsel %vm165, %v1625, 0.0
    %v1635 = vadd.f32 %v1633, %v1634
    %v1636 = vsel %vm165, %v1626, 0.0
    %v1637 = vadd.f32 %v1635, %v1636
    %v1638 = vsel %vm165, %v1627, 0.0
    %v1639 = vadd.f32 %v1637, %v1638
    %v1640 = vsel %vm165, %v1628, 0.0
    %v1641 = vadd.f32 %v1639, %v1640
    %v1642 = vsel %vm165, %v1629, 0.0
    %v1643 = vadd.f32 %v1641, %v1642
    %v1644 = vsel %vm165, %v1630, 0.0
    %v1645 = vadd.f32 %v1643, %v1644
    %1646 = vadd.xlane.f32.xlu0 %v1645
    %v1647 = vpop.xlane.xlu0 %1646
    %v1648 = vld [vmem:[%s6] sm:$0x1]
    %v1650 = vlaneseq
    %v1651 = vshrl.u32 %v1650, 7
    %v1652 = vsub.s32 0, %v1651
    %v1653 = vrot.slane %v1648, %v1652
    %v1655 = vadd.f32 %v1647, %v1653
    %1657 = vrot.lane.b32.xlu0 %v1655, 127
    %v1658 = vpop.permute.xlu0 %1657
    %1660 = vst.msk [vmem:[%s8] sm:$0x3] %vm1578, %v1658
    // Predicated region
    $region46: #{tpu_custom_call.1} parent=1 // pred_check
      _
    $region47: #{tpu_custom_call.1} parent=1 // pred_check_branch
      %1662 = sbr.rel (0) target = $region49
    $region48: #{tpu_custom_call.1} parent=1 // pred_region
      _
    $region49: #{tpu_custom_call.1} parent=1 // pred_fallthru
      _
    // Predicated region
    $region50: #{tpu_custom_call.1} parent=1 // pred_check
      _
    $region51: #{tpu_custom_call.1} parent=1 // pred_check_branch
      %1664 = sbr.rel (0) target = $region53
    $region52: #{tpu_custom_call.1} parent=1 // pred_region
      _
    $region53: #{tpu_custom_call.1} parent=1 // pred_fallthru
      _
    // Predicated region
    $region54: #{tpu_custom_call.1} parent=1 // pred_check
      _
    $region55: #{tpu_custom_call.1} parent=1 // pred_check_branch
      %1666 = sbr.rel (0) target = $region57
    $region56: #{tpu_custom_call.1} parent=1 // pred_region
      _
    $region57: #{tpu_custom_call.1} parent=1 // pred_fallthru
      _
    // Predicated region
    $region58: #{tpu_custom_call.1} parent=1 // pred_check
      _
    $region59: #{tpu_custom_call.1} parent=1 // pred_check_branch
      %1668 = sbr.rel (0) target = $region61
    $region60: #{tpu_custom_call.1} parent=1 // pred_region
      _
    $region61: #{tpu_custom_call.1} parent=1 // pred_fallthru
      _
    %1669 = vsyncpa [#allocation3], 1
    %1670 = vsyncpa [#allocation5], 1
    %1671 = vsyncpa [#allocation8], 1

</llo_original>
